<compile_context>
chip_gen: v7x
topology: tpu7x:2x2x1
jax: 0.10.0
libtpu: 0.0.40
codegen_flags: <defaults>
</compile_context>

<pallas_src>
import functools

import jax
import jax.numpy as jnp
import numpy as np
from jax import lax
from jax.experimental import pallas as pl
from jax.experimental.pallas import tpu as pltpu

# ----------------------------------------------------------------------------
# Module-consistent (small) shapes.  The real module uses image_h=240,
# image_w=256; we scale the image down but keep the exact structure:
#   pool_out_size = num_kernels * (H // 2) * (W // 2)
# ----------------------------------------------------------------------------
N = 2            # batch
C_IN = 3         # fixed by nn.Conv2d(3, ...)
C_OUT = 16       # num_kernels
IMAGE_H = 16
IMAGE_W = 16
H_P, W_P = IMAGE_H // 2, IMAGE_W // 2
S = H_P * W_P                     # pooled spatial positions per image
POOL_OUT = C_OUT * S              # fc1 input size (PyTorch .view order)
FC1 = 64
FC2 = 2
KH = KW = 3
K_RAW = KH * KW * C_IN            # 27
K_PAD = 32                        # padded to a sublane multiple
LANE = 128


def _round_up(x, m):
    return (x + m - 1) // m * m


def _pick_tile(total, candidates):
    """Largest candidate that divides `total` (candidates sorted descending)."""
    for c in candidates:
        if c <= total and total % c == 0:
            return c
    return total


# ----------------------------------------------------------------------------
# Kernel 1: fused conv3x3(pad=1) + maxpool2x2(stride=2), transposed layout.
#   pT_ref : (K_PAD, nb*4*ts) bf16  im2col columns of this spatial tile,
#            column order = (batch n, pool-window slab, pooled position)
#   wT_ref : (C_OUT, K_PAD)   bf16  conv weight as a matmul LHS
#   b_ref  : (C_OUT, 1)       f32   conv bias (per-sublane, lane-broadcast)
#   o_ref  : (nb, C_OUT, ts)  bf16  pooled output; row-major == NCHW flatten
# ----------------------------------------------------------------------------
def conv_pool_kernel(pT_ref, wT_ref, b_ref, o_ref, *, nb, ts):
    # One long MXU push: (C_OUT, K_PAD) @ (K_PAD, nb*4*ts) with f32 accumulate.
    conv_t = jnp.dot(wT_ref[...], pT_ref[...],
                     preferred_element_type=jnp.float32)
    bias = b_ref[...]                              # (C_OUT, 1) f32
    for n in range(nb):                            # tiny static loops (nb=2, 4 slabs)
        base = n * 4 * ts
        m = conv_t[:, base:base + ts]
        for j in range(1, 4):
            m = jnp.maximum(m, conv_t[:, base + j * ts: base + (j + 1) * ts])
        # bias after max == bias before max (max is shift-equivariant).
        o_ref[n, :, :] = (m + bias).astype(o_ref.dtype)


# ----------------------------------------------------------------------------
# Kernel 2: fc1 (tiled over its contraction dim) -> ReLU -> fc2.
# ----------------------------------------------------------------------------
def mlp_kernel(x_ref, w1_ref, b1_ref, w2_ref, b2_ref, o_ref, acc_ref):
    d = pl.program_id(0)

    @pl.when(d == 0)
    def _():
        acc_ref[...] = jnp.zeros_like(acc_ref)

    acc_ref[...] += jnp.dot(x_ref[...], w1_ref[...],
                            preferred_element_type=jnp.float32)

    @pl.when(d == pl.num_programs(0) - 1)
    def _():
        h = jnp.maximum(acc_ref[...] + b1_ref[...], 0.0)
        o_ref[...] = (jnp.dot(h, w2_ref[...],
                              preferred_element_type=jnp.float32)
                      + b2_ref[...])


# ----------------------------------------------------------------------------
# One-time parameter re-layout (done once, outside the per-call forward).
# ----------------------------------------------------------------------------
def prepare_params(params, s_pad):
    w_conv, b_conv, w1, b1, w2, b2 = params
    cout, cin = w_conv.shape[0], w_conv.shape[1]
    # conv weight (Cout,Cin,kh,kw) -> (Cout, kh,kw,Cin) -> (Cout, 27) -> pad K.
    w_t = jnp.transpose(w_conv, (0, 2, 3, 1)).reshape(cout, KH * KW * cin)
    w_t = jnp.pad(w_t, ((0, 0), (0, K_PAD - KH * KW * cin))).astype(jnp.bfloat16)
    b_col = b_conv.reshape(cout, 1).astype(jnp.float32)
    # fc1 weight: fold NCHW .view() order + spatial padding into a row permutation.
    fc1_size, pool_out = w1.shape
    s = pool_out // cout
    w1p = w1.reshape(fc1_size, cout, s)           # [f, c, s]
    w1p = jnp.transpose(w1p, (1, 2, 0))           # [c, s, f]
    w1p = jnp.pad(w1p, ((0, 0), (0, s_pad - s), (0, 0)))   # zero rows for pad cols
    w1p = w1p.reshape(cout * s_pad, fc1_size).astype(jnp.bfloat16)
    b1r = b1.reshape(1, fc1_size).astype(jnp.float32)
    w2t = jnp.transpose(w2).astype(jnp.float32)
    b2r = b2.reshape(1, w2.shape[0]).astype(jnp.float32)
    return (w_t, b_col, w1p, b1r, w2t, b2r)


# ----------------------------------------------------------------------------
# Forward pass
# ----------------------------------------------------------------------------
def cnn_forward(x, prep):
    w_t, b_col, w1p, b1r, w2t, b2r = prep
    n, cin, h, w = x.shape
    hp, wp = h // 2, w // 2
    s = hp * wp
    cout = w_t.shape[0]
    fc1_size = w1p.shape[1]
    fc2_size = w2t.shape[1]
    s_pad = w1p.shape[0] // cout
    ts = _pick_tile(s_pad, (512, 256, 128))
    num_tiles = s_pad // ts
    cols_per_tile = n * 4 * ts

    # ---- glue: transposed, K-padded im2col columns (bf16) -------------------
    # TODO(synk): build these taps inside the kernel from the padded image to
    # avoid the im2col HBM blow-up at full 240x256 size.
    x_nhwc = jnp.transpose(x, (0, 2, 3, 1))
    xpad = jnp.pad(x_nhwc, ((0, 0), (1, 1), (1, 1), (0, 0)))
    taps = [xpad[:, kh:kh + h, kw:kw + w, :] for kh in range(KH) for kw in range(KW)]
    cols = jnp.stack(taps, axis=3).reshape(n, h, w, KH * KW * cin)   # (n,H,W,27)
    cols = jnp.pad(cols, ((0, 0), (0, 0), (0, 0), (0, K_PAD - KH * KW * cin)))
    cols = cols.reshape(n, hp, 2, wp, 2, K_PAD)          # (n, ph, dh, pw, dw, k)
    pT = jnp.transpose(cols, (5, 0, 2, 4, 1, 3))         # (k, n, dh, dw, ph, pw)
    pT = pT.reshape(K_PAD, n, 4, s)                      # slab = dh*2+dw, s = ph*Wp+pw
    pT = jnp.pad(pT, ((0, 0), (0, 0), (0, 0), (0, s_pad - s)))
    pT = pT.reshape(K_PAD, n, 4, num_tiles, ts)
    pT = jnp.transpose(pT, (0, 3, 1, 2, 4))              # (k, tile, n, slab, s_local)
    pT = pT.reshape(K_PAD, num_tiles * cols_per_tile).astype(jnp.bfloat16)

    pooled = pl.pallas_call(
        functools.partial(conv_pool_kernel, nb=n, ts=ts),
        out_shape=jax.ShapeDtypeStruct((n, cout, s_pad), jnp.bfloat16),
        grid=(num_tiles,),
        in_specs=[
            pl.BlockSpec((K_PAD, cols_per_tile), lambda i: (0, i)),
            pl.BlockSpec((cout, K_PAD), lambda i: (0, 0)),
            pl.BlockSpec((cout, 1), lambda i: (0, 0)),
        ],
        out_specs=pl.BlockSpec((n, cout, ts), lambda i: (0, 0, i)),
        compiler_params=pltpu.CompilerParams(
            dimension_semantics=("parallel",)),
    )(pT, w_t, b_col)

    # Row-major flatten of (n, cout, s_pad) == PyTorch's NCHW .view() order
    # (padded spatial columns hit the zero rows of w1p). No transpose needed.
    fc_in = pooled.reshape(n, cout * s_pad)

    d_pad = cout * s_pad
    td = _pick_tile(d_pad, (16384, 8192, 4096, 2048))
    out = pl.pallas_call(
        mlp_kernel,
        out_shape=jax.ShapeDtypeStruct((n, fc2_size), jnp.float32),
        grid=(d_pad // td,),
        in_specs=[
            pl.BlockSpec((n, td), lambda d: (0, d)),
            pl.BlockSpec((td, fc1_size), lambda d: (d, 0)),
            pl.BlockSpec((1, fc1_size), lambda d: (0, 0)),
            pl.BlockSpec((fc1_size, fc2_size), lambda d: (0, 0)),
            pl.BlockSpec((1, fc2_size), lambda d: (0, 0)),
        ],
        out_specs=pl.BlockSpec((n, fc2_size), lambda d: (0, 0)),
        scratch_shapes=[pltpu.VMEM((n, fc1_size), jnp.float32)],
        compiler_params=pltpu.CompilerParams(
            dimension_semantics=("arbitrary",)),
    )(fc_in, w1p, b1r, w2t, b2r)
    return out


# ----------------------------------------------------------------------------
# Pure-JAX reference (mirrors the PyTorch forward) for a sanity check.
# ----------------------------------------------------------------------------
def reference_forward(x, params):
    w_conv, b_conv, w1, b1, w2, b2 = params
    conv = lax.conv_general_dilated(
        x, w_conv, window_strides=(1, 1), padding="SAME",
        dimension_numbers=("NCHW", "OIHW", "NCHW"),
    ) + b_conv[None, :, None, None]
    pool = lax.reduce_window(
        conv, -jnp.inf, lax.max, (1, 1, 2, 2), (1, 1, 2, 2), "VALID"
    )
    flat = pool.reshape(pool.shape[0], -1)        # pool_out (no ReLU) feeds fc1
    h = jnp.maximum(flat @ w1.T + b1, 0.0)
    return h @ w2.T + b2


if __name__ == "__main__":
    key = jax.random.PRNGKey(0)
    ks = jax.random.split(key, 7)
    w_conv = jax.random.normal(ks[0], (C_OUT, C_IN, KH, KW), jnp.float32) * 0.1
    b_conv = jax.random.normal(ks[1], (C_OUT,), jnp.float32) * 0.1
    w1 = jax.random.normal(ks[2], (FC1, POOL_OUT), jnp.float32) * 0.02
    b1 = jax.random.normal(ks[3], (FC1,), jnp.float32) * 0.1
    w2 = jax.random.normal(ks[4], (FC2, FC1), jnp.float32) * 0.1
    b2 = jax.random.normal(ks[5], (FC2,), jnp.float32) * 0.1
    params = (w_conv, b_conv, w1, b1, w2, b2)

    x = jax.random.normal(ks[6], (N, C_IN, IMAGE_H, IMAGE_W), jnp.float32)

    s_pad = _round_up(S, LANE)
    prep = prepare_params(params, s_pad)          # one-time weight re-layout

    out = jax.jit(cnn_forward)(x, prep)
    out = jax.block_until_ready(out)

    ref = jax.block_until_ready(reference_forward(x, params))
    max_diff = float(jnp.max(jnp.abs(out - ref)))
    assert out.shape == (N, FC2), out.shape
    assert np.isfinite(np.asarray(out)).all()
    assert max_diff < 5e-2, f"mismatch vs reference: {max_diff}"

    print("KERNEL_OK")
</pallas_src>

<mosaic_0001>
module attributes {stable_mosaic.version = 11 : i64} {
  func.func @conv_pool_kernel(%arg0: i32, %arg1: memref<32x1024xbf16, #tpu.memory_space<vmem>>, %arg2: memref<16x32xbf16, #tpu.memory_space<vmem>>, %arg3: memref<16x1xf32, #tpu.memory_space<vmem>>, %arg4: memref<2x16x128xbf16, #tpu.memory_space<vmem>>) attributes {dimension_semantics = [#tpu.dimension_semantics<parallel>], iteration_bounds = array<i64: 1>, scalar_prefetch = 0 : i64, scratch_operands = 0 : i64, tpu.core_type = #tpu.core_type<tc>, window_params = [{transform_indices = @transform_0, window_bounds = array<i64: 32, 1024>}, {pipeline_mode = #tpu.pipeline_mode<synchronous>, transform_indices = @transform_1, window_bounds = array<i64: 16, 32>}, {pipeline_mode = #tpu.pipeline_mode<synchronous>, transform_indices = @transform_2, window_bounds = array<i64: 16, 1>}, {transform_indices = @transform_3, window_bounds = array<i64: 2, 16, 128>}]} {
    %c0 = arith.constant 0 : index
    %c0_0 = arith.constant 0 : index
    %0 = vector.load %arg2[%c0, %c0_0] : memref<16x32xbf16, #tpu.memory_space<vmem>>, vector<16x32xbf16>
    %c0_1 = arith.constant 0 : index
    %c0_2 = arith.constant 0 : index
    %1 = vector.load %arg1[%c0_1, %c0_2] : memref<32x1024xbf16, #tpu.memory_space<vmem>>, vector<32x1024xbf16>
    %cst = arith.constant dense<0.000000e+00> : vector<16x1024xf32>
    %2 = tpu.matmul %0, %1, %cst {dimension_numbers = #tpu.dot_dimension_numbers<[1], [0], [0], [1], [0, 0, 1, 1], [], []>} : vector<16x32xbf16>, vector<32x1024xbf16>, vector<16x1024xf32> -> vector<16x1024xf32>
    %c0_3 = arith.constant 0 : index
    %c0_4 = arith.constant 0 : index
    %3 = vector.load %arg3[%c0_3, %c0_4] : memref<16x1xf32, #tpu.memory_space<vmem>>, vector<16x1xf32>
    %4 = vector.extract_strided_slice %2 {offsets = [0, 0], sizes = [16, 128], strides = [1, 1]} : vector<16x1024xf32> to vector<16x128xf32>
    %5 = vector.extract_strided_slice %2 {offsets = [0, 128], sizes = [16, 128], strides = [1, 1]} : vector<16x1024xf32> to vector<16x128xf32>
    %6 = arith.maximumf %4, %5 : vector<16x128xf32>
    %7 = vector.extract_strided_slice %2 {offsets = [0, 256], sizes = [16, 128], strides = [1, 1]} : vector<16x1024xf32> to vector<16x128xf32>
    %8 = arith.maximumf %6, %7 : vector<16x128xf32>
    %9 = vector.extract_strided_slice %2 {offsets = [0, 384], sizes = [16, 128], strides = [1, 1]} : vector<16x1024xf32> to vector<16x128xf32>
    %10 = arith.maximumf %8, %9 : vector<16x128xf32>
    %11 = vector.broadcast %3 : vector<16x1xf32> to vector<16x128xf32>
    %12 = arith.addf %10, %11 : vector<16x128xf32>
    %13 = arith.truncf %12 : vector<16x128xf32> to vector<16x128xbf16>
    %c0_5 = arith.constant 0 : index
    %c0_6 = arith.constant 0 : index
    %c0_7 = arith.constant 0 : index
    %14 = vector.load %arg4[%c0_5, %c0_6, %c0_7] : memref<2x16x128xbf16, #tpu.memory_space<vmem>>, vector<1x16x128xbf16>
    %15 = vector.shape_cast %14 : vector<1x16x128xbf16> to vector<16x128xbf16>
    %16 = vector.shape_cast %13 : vector<16x128xbf16> to vector<1x16x128xbf16>
    tpu.vector_store %arg4[%c0_5, %c0_6, %c0_7], %16 {strides = array<i32>} : memref<2x16x128xbf16, #tpu.memory_space<vmem>>, vector<1x16x128xbf16>,
    %17 = vector.extract_strided_slice %2 {offsets = [0, 512], sizes = [16, 128], strides = [1, 1]} : vector<16x1024xf32> to vector<16x128xf32>
    %18 = vector.extract_strided_slice %2 {offsets = [0, 640], sizes = [16, 128], strides = [1, 1]} : vector<16x1024xf32> to vector<16x128xf32>
    %19 = arith.maximumf %17, %18 : vector<16x128xf32>
    %20 = vector.extract_strided_slice %2 {offsets = [0, 768], sizes = [16, 128], strides = [1, 1]} : vector<16x1024xf32> to vector<16x128xf32>
    %21 = arith.maximumf %19, %20 : vector<16x128xf32>
    %22 = vector.extract_strided_slice %2 {offsets = [0, 896], sizes = [16, 128], strides = [1, 1]} : vector<16x1024xf32> to vector<16x128xf32>
    %23 = arith.maximumf %21, %22 : vector<16x128xf32>
    %24 = vector.broadcast %3 : vector<16x1xf32> to vector<16x128xf32>
    %25 = arith.addf %23, %24 : vector<16x128xf32>
    %26 = arith.truncf %25 : vector<16x128xf32> to vector<16x128xbf16>
    %c1 = arith.constant 1 : index
    %c0_8 = arith.constant 0 : index
    %c0_9 = arith.constant 0 : index
    %27 = vector.load %arg4[%c1, %c0_8, %c0_9] : memref<2x16x128xbf16, #tpu.memory_space<vmem>>, vector<1x16x128xbf16>
    %28 = vector.shape_cast %27 : vector<1x16x128xbf16> to vector<16x128xbf16>
    %29 = vector.shape_cast %26 : vector<16x128xbf16> to vector<1x16x128xbf16>
    tpu.vector_store %arg4[%c1, %c0_8, %c0_9], %29 {strides = array<i32>} : memref<2x16x128xbf16, #tpu.memory_space<vmem>>, vector<1x16x128xbf16>,
    return
  }
  func.func @transform_0(%arg0: i32) -> (i32, i32) {
    %c0_i32 = arith.constant 0 : i32
    %c0_i32_0 = arith.constant 0 : i32
    return %c0_i32, %arg0 : i32, i32
  }
  func.func @transform_1(%arg0: i32) -> (i32, i32) {
    %c0_i32 = arith.constant 0 : i32
    %c0_i32_0 = arith.constant 0 : i32
    %c0_i32_1 = arith.constant 0 : i32
    return %c0_i32, %c0_i32_0 : i32, i32
  }
  func.func @transform_2(%arg0: i32) -> (i32, i32) {
    %c0_i32 = arith.constant 0 : i32
    %c0_i32_0 = arith.constant 0 : i32
    %c0_i32_1 = arith.constant 0 : i32
    return %c0_i32, %c0_i32_0 : i32, i32
  }
  func.func @transform_3(%arg0: i32) -> (i32, i32, i32) {
    %c0_i32 = arith.constant 0 : i32
    %c0_i32_0 = arith.constant 0 : i32
    %c0_i32_1 = arith.constant 0 : i32
    return %c0_i32, %c0_i32_0, %arg0 : i32, i32, i32
  }
}

module attributes {stable_mosaic.version = 11 : i64} {
  func.func @mlp_kernel(%arg0: i32, %arg1: memref<2x2048xbf16, #tpu.memory_space<vmem>>, %arg2: memref<2048x64xbf16, #tpu.memory_space<vmem>>, %arg3: memref<1x64xf32, #tpu.memory_space<vmem>>, %arg4: memref<64x2xf32, #tpu.memory_space<vmem>>, %arg5: memref<1x2xf32, #tpu.memory_space<vmem>>, %arg6: memref<2x2xf32, #tpu.memory_space<vmem>>, %arg7: memref<2x64xf32, #tpu.memory_space<vmem>>) attributes {dimension_semantics = [#tpu.dimension_semantics<arbitrary>], iteration_bounds = array<i64: 1>, scalar_prefetch = 0 : i64, scratch_operands = 1 : i64, tpu.core_type = #tpu.core_type<tc>, window_params = [{transform_indices = @transform_0, window_bounds = array<i64: 2, 2048>}, {transform_indices = @transform_1, window_bounds = array<i64: 2048, 64>}, {pipeline_mode = #tpu.pipeline_mode<synchronous>, transform_indices = @transform_2, window_bounds = array<i64: 1, 64>}, {pipeline_mode = #tpu.pipeline_mode<synchronous>, transform_indices = @transform_3, window_bounds = array<i64: 64, 2>}, {pipeline_mode = #tpu.pipeline_mode<synchronous>, transform_indices = @transform_4, window_bounds = array<i64: 1, 2>}, {pipeline_mode = #tpu.pipeline_mode<synchronous>, transform_indices = @transform_5, window_bounds = array<i64: 2, 2>}]} {
    %c0_i32 = arith.constant 0 : i32
    %0 = arith.cmpi eq, %arg0, %c0_i32 : i32
    %1 = arith.extui %0 : i1 to i32
    %c0_i32_0 = arith.constant 0 : i32
    %2 = arith.cmpi ne, %1, %c0_i32_0 : i32
    scf.if %2 {
      %cst_10 = arith.constant 0.000000e+00 : f32
      %12 = vector.broadcast %cst_10 : f32 to vector<2x64xf32>
      %c0_11 = arith.constant 0 : index
      %c0_12 = arith.constant 0 : index
      %13 = vector.load %arg7[%c0_11, %c0_12] : memref<2x64xf32, #tpu.memory_space<vmem>>, vector<2x64xf32>
      tpu.vector_store %arg7[%c0_11, %c0_12], %12 {strides = array<i32>} : memref<2x64xf32, #tpu.memory_space<vmem>>, vector<2x64xf32>,
    } else {
    }
    %c0 = arith.constant 0 : index
    %c0_1 = arith.constant 0 : index
    %3 = vector.load %arg7[%c0, %c0_1] : memref<2x64xf32, #tpu.memory_space<vmem>>, vector<2x64xf32>
    %c0_2 = arith.constant 0 : index
    %c0_3 = arith.constant 0 : index
    %4 = vector.load %arg1[%c0_2, %c0_3] : memref<2x2048xbf16, #tpu.memory_space<vmem>>, vector<2x2048xbf16>
    %c0_4 = arith.constant 0 : index
    %c0_5 = arith.constant 0 : index
    %5 = vector.load %arg2[%c0_4, %c0_5] : memref<2048x64xbf16, #tpu.memory_space<vmem>>, vector<2048x64xbf16>
    %cst = arith.constant dense<0.000000e+00> : vector<2x64xf32>
    %6 = tpu.matmul %4, %5, %cst {dimension_numbers = #tpu.dot_dimension_numbers<[1], [0], [0], [1], [0, 0, 1, 1], [], []>} : vector<2x2048xbf16>, vector<2048x64xbf16>, vector<2x64xf32> -> vector<2x64xf32>
    %7 = arith.addf %3, %6 : vector<2x64xf32>
    %c0_6 = arith.constant 0 : index
    %c0_7 = arith.constant 0 : index
    %8 = vector.load %arg7[%c0_6, %c0_7] : memref<2x64xf32, #tpu.memory_space<vmem>>, vector<2x64xf32>
    tpu.vector_store %arg7[%c0_6, %c0_7], %7 {strides = array<i32>} : memref<2x64xf32, #tpu.memory_space<vmem>>, vector<2x64xf32>,
    %c0_i32_8 = arith.constant 0 : i32
    %9 = arith.cmpi eq, %arg0, %c0_i32_8 : i32
    %10 = arith.extui %9 : i1 to i32
    %c0_i32_9 = arith.constant 0 : i32
    %11 = arith.cmpi ne, %10, %c0_i32_9 : i32
    scf.if %11 {
      %c0_10 = arith.constant 0 : index
      %c0_11 = arith.constant 0 : index
      %12 = vector.load %arg7[%c0_10, %c0_11] : memref<2x64xf32, #tpu.memory_space<vmem>>, vector<2x64xf32>
      %c0_12 = arith.constant 0 : index
      %c0_13 = arith.constant 0 : index
      %13 = vector.load %arg3[%c0_12, %c0_13] : memref<1x64xf32, #tpu.memory_space<vmem>>, vector<1x64xf32>
      %14 = vector.broadcast %13 : vector<1x64xf32> to vector<2x64xf32>
      %15 = arith.addf %12, %14 : vector<2x64xf32>
      %cst_14 = arith.constant 0.000000e+00 : f32
      %16 = vector.broadcast %cst_14 : f32 to vector<2x64xf32>
      %17 = arith.maximumf %15, %16 : vector<2x64xf32>
      %c0_15 = arith.constant 0 : index
      %c0_16 = arith.constant 0 : index
      %18 = vector.load %arg4[%c0_15, %c0_16] : memref<64x2xf32, #tpu.memory_space<vmem>>, vector<64x2xf32>
      %cst_17 = arith.constant dense<0.000000e+00> : vector<2x2xf32>
      %19 = tpu.matmul %17, %18, %cst_17 {dimension_numbers = #tpu.dot_dimension_numbers<[1], [0], [0], [1], [0, 0, 1, 1], [], []>} : vector<2x64xf32>, vector<64x2xf32>, vector<2x2xf32> -> vector<2x2xf32>
      %c0_18 = arith.constant 0 : index
      %c0_19 = arith.constant 0 : index
      %20 = vector.load %arg5[%c0_18, %c0_19] : memref<1x2xf32, #tpu.memory_space<vmem>>, vector<1x2xf32>
      %21 = vector.broadcast %20 : vector<1x2xf32> to vector<2x2xf32>
      %22 = arith.addf %19, %21 : vector<2x2xf32>
      %c0_20 = arith.constant 0 : index
      %c0_21 = arith.constant 0 : index
      %23 = vector.load %arg6[%c0_20, %c0_21] : memref<2x2xf32, #tpu.memory_space<vmem>>, vector<2x2xf32>
      tpu.vector_store %arg6[%c0_20, %c0_21], %22 {strides = array<i32>} : memref<2x2xf32, #tpu.memory_space<vmem>>, vector<2x2xf32>,
    } else {
    }
    return
  }
  func.func @transform_0(%arg0: i32) -> (i32, i32) {
    %c0_i32 = arith.constant 0 : i32
    %c0_i32_0 = arith.constant 0 : i32
    return %c0_i32, %arg0 : i32, i32
  }
  func.func @transform_1(%arg0: i32) -> (i32, i32) {
    %c0_i32 = arith.constant 0 : i32
    %c0_i32_0 = arith.constant 0 : i32
    return %arg0, %c0_i32 : i32, i32
  }
  func.func @transform_2(%arg0: i32) -> (i32, i32) {
    %c0_i32 = arith.constant 0 : i32
    %c0_i32_0 = arith.constant 0 : i32
    %c0_i32_1 = arith.constant 0 : i32
    return %c0_i32, %c0_i32_0 : i32, i32
  }
  func.func @transform_3(%arg0: i32) -> (i32, i32) {
    %c0_i32 = arith.constant 0 : i32
    %c0_i32_0 = arith.constant 0 : i32
    %c0_i32_1 = arith.constant 0 : i32
    return %c0_i32, %c0_i32_0 : i32, i32
  }
  func.func @transform_4(%arg0: i32) -> (i32, i32) {
    %c0_i32 = arith.constant 0 : i32
    %c0_i32_0 = arith.constant 0 : i32
    %c0_i32_1 = arith.constant 0 : i32
    return %c0_i32, %c0_i32_0 : i32, i32
  }
  func.func @transform_5(%arg0: i32) -> (i32, i32) {
    %c0_i32 = arith.constant 0 : i32
    %c0_i32_0 = arith.constant 0 : i32
    %c0_i32_1 = arith.constant 0 : i32
    return %c0_i32, %c0_i32_0 : i32, i32
  }
}

</mosaic_0001>

<llo_original>
// kernel: cnn_forward.2
$region0: #{cnn_forward.2}
  #allocation0 [shape = 'u32[]', space=smem, size = 0x4, offset = 0x4, fixed_abs, tag = 'smem constant byte address 0x4 - core index']
  #allocation1 [shape = 'u32[144,128]{1,0:T(1,128)}', space=vmem, size = 0x12000, scoped, tag = 'internal scratch']
  %s0 = inlined_call_operand.vmem [shape: bf16[32,1024], index: 0, kind: input, shape index: {}]
  %s1 = inlined_call_operand.vmem [shape: bf16[16,32], index: 1, kind: input, shape index: {}]
  %s2 = inlined_call_operand.vmem [shape: f32[16,1], index: 2, kind: input, shape index: {}]
  %s3 = inlined_call_operand.vmem [shape: bf16[2,16,128], index: 3, kind: output, shape index: {}]
  %s4 = sld [smem:[#allocation0]]
  $region22: #{cnn_forward.2} parent=0
    _
  %s6 = ssub.s32 1, %s4
  %s7 = scalar_select 0, %s6, %s4
  // Predicated region
  $region2: #{cnn_forward.2} parent=0 // pred_check
    _
  $region3: #{cnn_forward.2} parent=0 // pred_check_branch
    %9 = sbr.rel (0) target = $region5
  $region4: #{cnn_forward.2} parent=0 // pred_region
    _
  $region5: #{cnn_forward.2} parent=0 // pred_fallthru
    _
  // Predicated region
  $region6: #{cnn_forward.2} parent=0 // pred_check
    _
  $region7: #{cnn_forward.2} parent=0 // pred_check_branch
    %11 = sbr.rel (0) target = $region9
  $region8: #{cnn_forward.2} parent=0 // pred_region
    _
  $region9: #{cnn_forward.2} parent=0 // pred_fallthru
    _
  // Predicated region
  $region10: #{cnn_forward.2} parent=0 // pred_check
    _
  $region11: #{cnn_forward.2} parent=0 // pred_check_branch
    %13 = sbr.rel (0) target = $region13
  $region12: #{cnn_forward.2} parent=0 // pred_region
    _
  $region13: #{cnn_forward.2} parent=0 // pred_fallthru
    _
  %v15 = vld [vmem:[%s1] sm:$0xf]
  %v16 = vld [vmem:[%s1 + $0x4] sm:$0xf]
  %v17 = vld [vmem:[%s0] sm:$0xff]
  %v18 = vld [vmem:[%s0 + $0x8] sm:$0xff]
  %v19 = vld [vmem:[%s0 + $0x10] sm:$0xff]
  %v20 = vld [vmem:[%s0 + $0x18] sm:$0xff]
  %v21 = vld [vmem:[%s0 + $0x20] sm:$0xff]
  %v22 = vld [vmem:[%s0 + $0x28] sm:$0xff]
  %v23 = vld [vmem:[%s0 + $0x30] sm:$0xff]
  %v24 = vld [vmem:[%s0 + $0x38] sm:$0xff]
  %v25 = vld [vmem:[%s0 + $0x40] sm:$0xff]
  %v26 = vld [vmem:[%s0 + $0x48] sm:$0xff]
  %v27 = vld [vmem:[%s0 + $0x50] sm:$0xff]
  %v28 = vld [vmem:[%s0 + $0x58] sm:$0xff]
  %v29 = vld [vmem:[%s0 + $0x60] sm:$0xff]
  %v30 = vld [vmem:[%s0 + $0x68] sm:$0xff]
  %v31 = vld [vmem:[%s0 + $0x70] sm:$0xff]
  %v32 = vld [vmem:[%s0 + $0x78] sm:$0xff]
  %v35 = vunpack.c.l.b16 %v15
  %v36 = vunpack.c.l.b16 %v16
  %v37 = vpack.c.b16 %v36, %v35
  %v54 = vunpack.c.l.b16 %v17
  %v55 = vunpack.c.h.b16 %v17
  %v56 = vunpack.c.l.b16 %v18
  %v57 = vunpack.c.h.b16 %v18
  %v58 = vunpack.c.l.b16 %v19
  %v59 = vunpack.c.h.b16 %v19
  %v60 = vunpack.c.l.b16 %v20
  %v61 = vunpack.c.h.b16 %v20
  %v62 = vunpack.c.l.b16 %v21
  %v63 = vunpack.c.h.b16 %v21
  %v64 = vunpack.c.l.b16 %v22
  %v65 = vunpack.c.h.b16 %v22
  %v66 = vunpack.c.l.b16 %v23
  %v67 = vunpack.c.h.b16 %v23
  %v68 = vunpack.c.l.b16 %v24
  %v69 = vunpack.c.h.b16 %v24
  %v70 = vunpack.c.l.b16 %v25
  %v71 = vunpack.c.h.b16 %v25
  %v72 = vunpack.c.l.b16 %v26
  %v73 = vunpack.c.h.b16 %v26
  %v74 = vunpack.c.l.b16 %v27
  %v75 = vunpack.c.h.b16 %v27
  %v76 = vunpack.c.l.b16 %v28
  %v77 = vunpack.c.h.b16 %v28
  %v78 = vunpack.c.l.b16 %v29
  %v79 = vunpack.c.h.b16 %v29
  %v80 = vunpack.c.l.b16 %v30
  %v81 = vunpack.c.h.b16 %v30
  %v82 = vunpack.c.l.b16 %v31
  %v83 = vunpack.c.h.b16 %v31
  %v84 = vunpack.c.l.b16 %v32
  %v85 = vunpack.c.h.b16 %v32
  %v86 = vpack.c.b16 %v62, %v54
  %v87 = vpack.c.b16 %v63, %v55
  %v88 = vpack.c.b16 %v64, %v56
  %v89 = vpack.c.b16 %v65, %v57
  %v90 = vpack.c.b16 %v66, %v58
  %v91 = vpack.c.b16 %v67, %v59
  %v92 = vpack.c.b16 %v68, %v60
  %v93 = vpack.c.b16 %v69, %v61
  %v94 = vpack.c.b16 %v78, %v70
  %v95 = vpack.c.b16 %v79, %v71
  %v96 = vpack.c.b16 %v80, %v72
  %v97 = vpack.c.b16 %v81, %v73
  %v98 = vpack.c.b16 %v82, %v74
  %v99 = vpack.c.b16 %v83, %v75
  %v100 = vpack.c.b16 %v84, %v76
  %v101 = vpack.c.b16 %v85, %v77
  %vm118 = vcmask 261120
  %v120 = vsel %vm118, %v37, 0
  %122 = vmatprep.subr.bf16.mxu0 %v87
  %123 = vmatpush1.bf16.msra.mxu0 %v86
  %124 = vmatprep.subr.bf16.mxu0 %v95
  %125 = vmatpush1.bf16.msra.mxu0 %v94
  %126 = vmatprep.subr.bf16.mxu0 0
  %127 = vmatpush1.bf16.msra.mxu0 0
  %128 = vmatprep.subr.bf16.mxu0 0
  %129 = vmatpush1.bf16.msra.mxu0 0
  %130 = vmatprep.subr.bf16.mxu0 0
  %131 = vmatpush1.bf16.msra.mxu0 0
  %132 = vmatprep.subr.bf16.mxu0 0
  %133 = vmatpush1.bf16.msra.mxu0 0
  %134 = vmatprep.subr.bf16.mxu0 0
  %135 = vmatpush1.bf16.msra.mxu0 0
  %136 = vmatprep.subr.bf16.mxu0 0
  %137 = vmatpush1.bf16.msra.mxu0 0
  %138 = vmatprep.subr.bf16.mxu0 0
  %139 = vmatpush1.bf16.msra.mxu0 0
  %140 = vmatprep.subr.bf16.mxu0 0
  %141 = vmatpush1.bf16.msra.mxu0 0
  %142 = vmatprep.subr.bf16.mxu0 0
  %143 = vmatpush1.bf16.msra.mxu0 0
  %144 = vmatprep.subr.bf16.mxu0 0
  %145 = vmatpush1.bf16.msra.mxu0 0
  %146 = vmatprep.subr.bf16.mxu0 0
  %147 = vmatpush1.bf16.msra.mxu0 0
  %148 = vmatprep.subr.bf16.mxu0 0
  %149 = vmatpush1.bf16.msra.mxu0 0
  %150 = vmatprep.subr.bf16.mxu0 0
  %151 = vmatpush1.bf16.msra.mxu0 0
  %152 = vmatprep.subr.bf16.mxu0 0
  %153 = vmatpush1.bf16.msra.mxu0 0
  %154 = vmatprep.mubr.bf16.mxu0 0
  %155 = vmatmul.mubr.bf16.gmra.mrb[0].mxu0 %v120
  %v156 = vpop.f32.mrb[0].mxu0
  %v157 = vadd.f32 0.0, %v156
  %v158 = vpop.f32.mrb[0].mxu0
  %v159 = vadd.f32 0.0, %v158
  %v160 = vpop.f32.mrb[0].mxu0
  %v161 = vadd.f32 0.0, %v160
  %v162 = vpop.f32.mrb[0].mxu0
  %v163 = vadd.f32 0.0, %v162
  %164 = vdwg.mxu0
  %165 = vmatprep.subr.bf16.mxu0 %v89
  %166 = vmatpush1.bf16.msra.mxu0 %v88
  %167 = vmatprep.subr.bf16.mxu0 %v97
  %168 = vmatpush1.bf16.msra.mxu0 %v96
  %169 = vmatprep.subr.bf16.mxu0 0
  %170 = vmatpush1.bf16.msra.mxu0 0
  %171 = vmatprep.subr.bf16.mxu0 0
  %172 = vmatpush1.bf16.msra.mxu0 0
  %173 = vmatprep.subr.bf16.mxu0 0
  %174 = vmatpush1.bf16.msra.mxu0 0
  %175 = vmatprep.subr.bf16.mxu0 0
  %176 = vmatpush1.bf16.msra.mxu0 0
  %177 = vmatprep.subr.bf16.mxu0 0
  %178 = vmatpush1.bf16.msra.mxu0 0
  %179 = vmatprep.subr.bf16.mxu0 0
  %180 = vmatpush1.bf16.msra.mxu0 0
  %181 = vmatprep.subr.bf16.mxu0 0
  %182 = vmatpush1.bf16.msra.mxu0 0
  %183 = vmatprep.subr.bf16.mxu0 0
  %184 = vmatpush1.bf16.msra.mxu0 0
  %185 = vmatprep.subr.bf16.mxu0 0
  %186 = vmatpush1.bf16.msra.mxu0 0
  %187 = vmatprep.subr.bf16.mxu0 0
  %188 = vmatpush1.bf16.msra.mxu0 0
  %189 = vmatprep.subr.bf16.mxu0 0
  %190 = vmatpush1.bf16.msra.mxu0 0
  %191 = vmatprep.subr.bf16.mxu0 0
  %192 = vmatpush1.bf16.msra.mxu0 0
  %193 = vmatprep.subr.bf16.mxu0 0
  %194 = vmatpush1.bf16.msra.mxu0 0
  %195 = vmatprep.subr.bf16.mxu0 0
  %196 = vmatpush1.bf16.msra.mxu0 0
  %197 = vmatprep.mubr.bf16.mxu0 0
  %198 = vmatmul.mubr.bf16.gmra.mrb[0].mxu0 %v120
  %v199 = vpop.f32.mrb[0].mxu0
  %v200 = vadd.f32 0.0, %v199
  %v201 = vpop.f32.mrb[0].mxu0
  %v202 = vadd.f32 0.0, %v201
  %v203 = vpop.f32.mrb[0].mxu0
  %v204 = vadd.f32 0.0, %v203
  %v205 = vpop.f32.mrb[0].mxu0
  %v206 = vadd.f32 0.0, %v205
  %207 = vdwg.mxu0
  %208 = vmatprep.subr.bf16.mxu0 %v91
  %209 = vmatpush1.bf16.msra.mxu0 %v90
  %210 = vmatprep.subr.bf16.mxu0 %v99
  %211 = vmatpush1.bf16.msra.mxu0 %v98
  %212 = vmatprep.subr.bf16.mxu0 0
  %213 = vmatpush1.bf16.msra.mxu0 0
  %214 = vmatprep.subr.bf16.mxu0 0
  %215 = vmatpush1.bf16.msra.mxu0 0
  %216 = vmatprep.subr.bf16.mxu0 0
  %217 = vmatpush1.bf16.msra.mxu0 0
  %218 = vmatprep.subr.bf16.mxu0 0
  %219 = vmatpush1.bf16.msra.mxu0 0
  %220 = vmatprep.subr.bf16.mxu0 0
  %221 = vmatpush1.bf16.msra.mxu0 0
  %222 = vmatprep.subr.bf16.mxu0 0
  %223 = vmatpush1.bf16.msra.mxu0 0
  %224 = vmatprep.subr.bf16.mxu0 0
  %225 = vmatpush1.bf16.msra.mxu0 0
  %226 = vmatprep.subr.bf16.mxu0 0
  %227 = vmatpush1.bf16.msra.mxu0 0
  %228 = vmatprep.subr.bf16.mxu0 0
  %229 = vmatpush1.bf16.msra.mxu0 0
  %230 = vmatprep.subr.bf16.mxu0 0
  %231 = vmatpush1.bf16.msra.mxu0 0
  %232 = vmatprep.subr.bf16.mxu0 0
  %233 = vmatpush1.bf16.msra.mxu0 0
  %234 = vmatprep.subr.bf16.mxu0 0
  %235 = vmatpush1.bf16.msra.mxu0 0
  %236 = vmatprep.subr.bf16.mxu0 0
  %237 = vmatpush1.bf16.msra.mxu0 0
  %238 = vmatprep.subr.bf16.mxu0 0
  %239 = vmatpush1.bf16.msra.mxu0 0
  %240 = vmatprep.mubr.bf16.mxu0 0
  %241 = vmatmul.mubr.bf16.gmra.mrb[0].mxu0 %v120
  %v242 = vpop.f32.mrb[0].mxu0
  %v243 = vadd.f32 0.0, %v242
  %v244 = vpop.f32.mrb[0].mxu0
  %v245 = vadd.f32 0.0, %v244
  %v246 = vpop.f32.mrb[0].mxu0
  %v247 = vadd.f32 0.0, %v246
  %v248 = vpop.f32.mrb[0].mxu0
  %v249 = vadd.f32 0.0, %v248
  %250 = vdwg.mxu0
  %251 = vmatprep.subr.bf16.mxu0 %v93
  %252 = vmatpush1.bf16.msra.mxu0 %v92
  %253 = vmatprep.subr.bf16.mxu0 %v101
  %254 = vmatpush1.bf16.msra.mxu0 %v100
  %255 = vmatprep.subr.bf16.mxu0 0
  %256 = vmatpush1.bf16.msra.mxu0 0
  %257 = vmatprep.subr.bf16.mxu0 0
  %258 = vmatpush1.bf16.msra.mxu0 0
  %259 = vmatprep.subr.bf16.mxu0 0
  %260 = vmatpush1.bf16.msra.mxu0 0
  %261 = vmatprep.subr.bf16.mxu0 0
  %262 = vmatpush1.bf16.msra.mxu0 0
  %263 = vmatprep.subr.bf16.mxu0 0
  %264 = vmatpush1.bf16.msra.mxu0 0
  %265 = vmatprep.subr.bf16.mxu0 0
  %266 = vmatpush1.bf16.msra.mxu0 0
  %267 = vmatprep.subr.bf16.mxu0 0
  %268 = vmatpush1.bf16.msra.mxu0 0
  %269 = vmatprep.subr.bf16.mxu0 0
  %270 = vmatpush1.bf16.msra.mxu0 0
  %271 = vmatprep.subr.bf16.mxu0 0
  %272 = vmatpush1.bf16.msra.mxu0 0
  %273 = vmatprep.subr.bf16.mxu0 0
  %274 = vmatpush1.bf16.msra.mxu0 0
  %275 = vmatprep.subr.bf16.mxu0 0
  %276 = vmatpush1.bf16.msra.mxu0 0
  %277 = vmatprep.subr.bf16.mxu0 0
  %278 = vmatpush1.bf16.msra.mxu0 0
  %279 = vmatprep.subr.bf16.mxu0 0
  %280 = vmatpush1.bf16.msra.mxu0 0
  %281 = vmatprep.subr.bf16.mxu0 0
  %282 = vmatpush1.bf16.msra.mxu0 0
  %283 = vmatprep.mubr.bf16.mxu0 0
  %284 = vmatmul.mubr.bf16.gmra.mrb[0].mxu0 %v120
  %v285 = vpop.f32.mrb[0].mxu0
  %v286 = vadd.f32 0.0, %v285
  %v287 = vpop.f32.mrb[0].mxu0
  %v288 = vadd.f32 0.0, %v287
  %v289 = vpop.f32.mrb[0].mxu0
  %v290 = vadd.f32 0.0, %v289
  %v291 = vpop.f32.mrb[0].mxu0
  %v292 = vadd.f32 0.0, %v291
  %293 = vdwg.mxu0
  %v294 = vld [vmem:[%s2] sm:$0xff]
  %v295 = vld [vmem:[%s2 + $0x8] sm:$0xff]
  %v296 = vmax.f32 %v157, %v159
  %v297 = vmax.f32 %v161, %v163
  %v298 = vmax.f32 %v296, %v200
  %v299 = vmax.f32 %v297, %v204
  %v300 = vmax.f32 %v298, %v202
  %v301 = vmax.f32 %v299, %v206
  %303 = vset.pattern.permute.xlu0 0
  %304 = vperm.xlu0 %303, %v294
  %v305 = vpop.permute.xlu0 %304
  %308 = vset.pattern.permute.xlu0 0
  %309 = vperm.xlu0 %308, %v295
  %v310 = vpop.permute.xlu0 %309
  %v312 = vadd.f32 %v300, %v305
  %v313 = vadd.f32 %v301, %v310
  %v314 = vpack.c.bf16 %v313, %v312
  %v316 = vunpack.c.l.b16 %v314
  %v317 = vunpack.c.h.b16 %v314
  %v318 = vpack.c.b16 %v316, %v316
  %v319 = vpack.c.b16 %v317, %v317
  %322 = vst [vmem:[%s3] sm:$0xf] %v318
  %323 = vst [vmem:[%s3 + $0x4] sm:$0xf] %v319
  %v324 = vmax.f32 %v243, %v245
  %v325 = vmax.f32 %v247, %v249
  %v326 = vmax.f32 %v324, %v286
  %v327 = vmax.f32 %v325, %v290
  %v328 = vmax.f32 %v326, %v288
  %v329 = vmax.f32 %v327, %v292
  %v330 = vadd.f32 %v328, %v305
  %v331 = vadd.f32 %v329, %v310
  %v332 = vpack.c.bf16 %v331, %v330
  %v334 = vunpack.c.l.b16 %v332
  %v335 = vunpack.c.h.b16 %v332
  %v336 = vpack.c.b16 %v334, %v334
  %v337 = vpack.c.b16 %v335, %v335
  %s340 = scalar_lea.vmem %s3, 8
  %341 = vst [vmem:[%s340] sm:$0xf] %v336
  %342 = vst [vmem:[%s340 + $0x4] sm:$0xf] %v337
  // Predicated region
  $region14: #{cnn_forward.2} parent=0 // pred_check
    _
  $region15: #{cnn_forward.2} parent=0 // pred_check_branch
    %344 = sbr.rel (0) target = $region17
  $region16: #{cnn_forward.2} parent=0 // pred_region
    _
  $region17: #{cnn_forward.2} parent=0 // pred_fallthru
    _
  // Predicated region
  $region18: #{cnn_forward.2} parent=0 // pred_check
    _
  $region19: #{cnn_forward.2} parent=0 // pred_check_branch
    %346 = sbr.rel (0) target = $region21
  $region20: #{cnn_forward.2} parent=0 // pred_region
    _
  $region21: #{cnn_forward.2} parent=0 // pred_fallthru
    _

// kernel: cnn_forward.3
$region0: #{cnn_forward.3}
  #allocation0 [shape = 'u32[]', space=smem, size = 0x4, offset = 0x4, fixed_abs, tag = 'smem constant byte address 0x4 - core index']
  #allocation1 [shape = 'u32[144,128]{1,0:T(1,128)}', space=vmem, size = 0x12000, scoped, tag = 'internal scratch']
  #allocation2 [shape = 'f32[2,64]{1,0:T(2,128)}', space=vmem, size = 0x400, scoped, tag = 'scratch operand']
  %s0 = inlined_call_operand.vmem [shape: bf16[2,2048], index: 0, kind: input, shape index: {}]
  %s1 = inlined_call_operand.vmem [shape: bf16[2048,64], index: 1, kind: input, shape index: {}]
  %s2 = inlined_call_operand.vmem [shape: f32[1,64], index: 2, kind: input, shape index: {}]
  %s3 = inlined_call_operand.vmem [shape: f32[64,2], index: 3, kind: input, shape index: {}]
  %s4 = inlined_call_operand.vmem [shape: f32[1,2], index: 4, kind: input, shape index: {}]
  %s5 = inlined_call_operand.hbm [shape: f32[2,2], index: 5, kind: output, shape index: {}]
  %s6 = sld [smem:[#allocation0]]
  $region38: #{cnn_forward.3} parent=0
    _
  %s8 = ssub.s32 1, %s6
  %s9 = scalar_select 0, %s8, %s6
  $region1: #{cnn_forward.3} parent=0
    #allocation3 [shape = 'u8[1024]{0}', space=vmem, size = 0x400, scoped, tag = 'output window, operand 0, single buffered']
    #allocation4 [shape = 's32[1]{0}', space=sflag, size = 0x4, scoped, tag = 'scoped memory for cnn_forward.3']
    %10 = vsyncpa [#allocation4], 0
    // Predicated region
    $region2: #{cnn_forward.3} parent=1 // pred_check
      _
    $region3: #{cnn_forward.3} parent=1 // pred_check_branch
      %12 = sbr.rel (0) target = $region5
    $region4: #{cnn_forward.3} parent=1 // pred_region
      _
    $region5: #{cnn_forward.3} parent=1 // pred_fallthru
      _
    // Predicated region
    $region6: #{cnn_forward.3} parent=1 // pred_check
      _
    $region7: #{cnn_forward.3} parent=1 // pred_check_branch
      %14 = sbr.rel (0) target = $region9
    $region8: #{cnn_forward.3} parent=1 // pred_region
      _
    $region9: #{cnn_forward.3} parent=1 // pred_fallthru
      _
    // Predicated region
    $region10: #{cnn_forward.3} parent=1 // pred_check
      _
    $region11: #{cnn_forward.3} parent=1 // pred_check_branch
      %16 = sbr.rel (0) target = $region13
    $region12: #{cnn_forward.3} parent=1 // pred_region
      _
    $region13: #{cnn_forward.3} parent=1 // pred_fallthru
      _
    // Predicated region
    $region14: #{cnn_forward.3} parent=1 // pred_check
      _
    $region15: #{cnn_forward.3} parent=1 // pred_check_branch
      %18 = sbr.rel (0) target = $region17
    $region16: #{cnn_forward.3} parent=1 // pred_region
      _
    $region17: #{cnn_forward.3} parent=1 // pred_fallthru
      _
    // Predicated region
    $region18: #{cnn_forward.3} parent=1 // pred_check
      _
    $region19: #{cnn_forward.3} parent=1 // pred_check_branch
      %20 = sbr.rel (0) target = $region21
    $region20: #{cnn_forward.3} parent=1 // pred_region
      _
    $region21: #{cnn_forward.3} parent=1 // pred_fallthru
      _
    %p22 = scmp.eq.s32.totalorder 0, 0
    // Predicated region
    $region22: #{cnn_forward.3} parent=1 // pred_check
      %p23 = pneg %p22
    $region23: #{cnn_forward.3} parent=1 // pred_check_branch
      %25 = sbr.rel (%p23) target = $region25
    $region24: #{cnn_forward.3} parent=1 // pred_region
      %vm26 = vcmask 517120
      %27 = vst.msk [vmem:[#allocation2] sm:$0x3] %vm26, 0.0
    $region25: #{cnn_forward.3} parent=1 // pred_fallthru
      _
    %v28 = vld [vmem:[#allocation2] sm:$0x3]
    %v29 = vld [vmem:[%s0] sm:$0xff]
    %v30 = vld [vmem:[%s0 + $0x8] sm:$0xff]
    %v31 = vld [vmem:[%s1] sm:$0xf]
    %v32 = vld [vmem:[%s1 + $0x4] sm:$0xf]
    %v33 = vld [vmem:[%s1 + $0x8] sm:$0xf]
    %v34 = vld [vmem:[%s1 + $0xc] sm:$0xf]
    %v35 = vld [vmem:[%s1 + $0x10] sm:$0xf]
    %v36 = vld [vmem:[%s1 + $0x14] sm:$0xf]
    %v37 = vld [vmem:[%s1 + $0x18] sm:$0xf]
    %v38 = vld [vmem:[%s1 + $0x1c] sm:$0xf]
    %v39 = vld [vmem:[%s1 + $0x20] sm:$0xf]
    %v40 = vld [vmem:[%s1 + $0x24] sm:$0xf]
    %v41 = vld [vmem:[%s1 + $0x28] sm:$0xf]
    %v42 = vld [vmem:[%s1 + $0x2c] sm:$0xf]
    %v43 = vld [vmem:[%s1 + $0x30] sm:$0xf]
    %v44 = vld [vmem:[%s1 + $0x34] sm:$0xf]
    %v45 = vld [vmem:[%s1 + $0x38] sm:$0xf]
    %v46 = vld [vmem:[%s1 + $0x3c] sm:$0xf]
    %v47 = vld [vmem:[%s1 + $0x40] sm:$0xf]
    %v48 = vld [vmem:[%s1 + $0x44] sm:$0xf]
    %v49 = vld [vmem:[%s1 + $0x48] sm:$0xf]
    %v50 = vld [vmem:[%s1 + $0x4c] sm:$0xf]
    %v51 = vld [vmem:[%s1 + $0x50] sm:$0xf]
    %v52 = vld [vmem:[%s1 + $0x54] sm:$0xf]
    %v53 = vld [vmem:[%s1 + $0x58] sm:$0xf]
    %v54 = vld [vmem:[%s1 + $0x5c] sm:$0xf]
    %v55 = vld [vmem:[%s1 + $0x60] sm:$0xf]
    %v56 = vld [vmem:[%s1 + $0x64] sm:$0xf]
    %v57 = vld [vmem:[%s1 + $0x68] sm:$0xf]
    %v58 = vld [vmem:[%s1 + $0x6c] sm:$0xf]
    %v59 = vld [vmem:[%s1 + $0x70] sm:$0xf]
    %v60 = vld [vmem:[%s1 + $0x74] sm:$0xf]
    %v61 = vld [vmem:[%s1 + $0x78] sm:$0xf]
    %v62 = vld [vmem:[%s1 + $0x7c] sm:$0xf]
    %v63 = vld [vmem:[%s1 + $0x80] sm:$0xf]
    %v64 = vld [vmem:[%s1 + $0x84] sm:$0xf]
    %v65 = vld [vmem:[%s1 + $0x88] sm:$0xf]
    %v66 = vld [vmem:[%s1 + $0x8c] sm:$0xf]
    %v67 = vld [vmem:[%s1 + $0x90] sm:$0xf]
    %v68 = vld [vmem:[%s1 + $0x94] sm:$0xf]
    %v69 = vld [vmem:[%s1 + $0x98] sm:$0xf]
    %v70 = vld [vmem:[%s1 + $0x9c] sm:$0xf]
    %v71 = vld [vmem:[%s1 + $0xa0] sm:$0xf]
    %v72 = vld [vmem:[%s1 + $0xa4] sm:$0xf]
    %v73 = vld [vmem:[%s1 + $0xa8] sm:$0xf]
    %v74 = vld [vmem:[%s1 + $0xac] sm:$0xf]
    %v75 = vld [vmem:[%s1 + $0xb0] sm:$0xf]
    %v76 = vld [vmem:[%s1 + $0xb4] sm:$0xf]
    %v77 = vld [vmem:[%s1 + $0xb8] sm:$0xf]
    %v78 = vld [vmem:[%s1 + $0xbc] sm:$0xf]
    %v79 = vld [vmem:[%s1 + $0xc0] sm:$0xf]
    %v80 = vld [vmem:[%s1 + $0xc4] sm:$0xf]
    %v81 = vld [vmem:[%s1 + $0xc8] sm:$0xf]
    %v82 = vld [vmem:[%s1 + $0xcc] sm:$0xf]
    %v83 = vld [vmem:[%s1 + $0xd0] sm:$0xf]
    %v84 = vld [vmem:[%s1 + $0xd4] sm:$0xf]
    %v85 = vld [vmem:[%s1 + $0xd8] sm:$0xf]
    %v86 = vld [vmem:[%s1 + $0xdc] sm:$0xf]
    %v87 = vld [vmem:[%s1 + $0xe0] sm:$0xf]
    %v88 = vld [vmem:[%s1 + $0xe4] sm:$0xf]
    %v89 = vld [vmem:[%s1 + $0xe8] sm:$0xf]
    %v90 = vld [vmem:[%s1 + $0xec] sm:$0xf]
    %v91 = vld [vmem:[%s1 + $0xf0] sm:$0xf]
    %v92 = vld [vmem:[%s1 + $0xf4] sm:$0xf]
    %v93 = vld [vmem:[%s1 + $0xf8] sm:$0xf]
    %v94 = vld [vmem:[%s1 + $0xfc] sm:$0xf]
    %v95 = vld [vmem:[%s1 + $0x100] sm:$0xf]
    %v96 = vld [vmem:[%s1 + $0x104] sm:$0xf]
    %v97 = vld [vmem:[%s1 + $0x108] sm:$0xf]
    %v98 = vld [vmem:[%s1 + $0x10c] sm:$0xf]
    %v99 = vld [vmem:[%s1 + $0x110] sm:$0xf]
    %v100 = vld [vmem:[%s1 + $0x114] sm:$0xf]
    %v101 = vld [vmem:[%s1 + $0x118] sm:$0xf]
    %v102 = vld [vmem:[%s1 + $0x11c] sm:$0xf]
    %v103 = vld [vmem:[%s1 + $0x120] sm:$0xf]
    %v104 = vld [vmem:[%s1 + $0x124] sm:$0xf]
    %v105 = vld [vmem:[%s1 + $0x128] sm:$0xf]
    %v106 = vld [vmem:[%s1 + $0x12c] sm:$0xf]
    %v107 = vld [vmem:[%s1 + $0x130] sm:$0xf]
    %v108 = vld [vmem:[%s1 + $0x134] sm:$0xf]
    %v109 = vld [vmem:[%s1 + $0x138] sm:$0xf]
    %v110 = vld [vmem:[%s1 + $0x13c] sm:$0xf]
    %v111 = vld [vmem:[%s1 + $0x140] sm:$0xf]
    %v112 = vld [vmem:[%s1 + $0x144] sm:$0xf]
    %v113 = vld [vmem:[%s1 + $0x148] sm:$0xf]
    %v114 = vld [vmem:[%s1 + $0x14c] sm:$0xf]
    %v115 = vld [vmem:[%s1 + $0x150] sm:$0xf]
    %v116 = vld [vmem:[%s1 + $0x154] sm:$0xf]
    %v117 = vld [vmem:[%s1 + $0x158] sm:$0xf]
    %v118 = vld [vmem:[%s1 + $0x15c] sm:$0xf]
    %v119 = vld [vmem:[%s1 + $0x160] sm:$0xf]
    %v120 = vld [vmem:[%s1 + $0x164] sm:$0xf]
    %v121 = vld [vmem:[%s1 + $0x168] sm:$0xf]
    %v122 = vld [vmem:[%s1 + $0x16c] sm:$0xf]
    %v123 = vld [vmem:[%s1 + $0x170] sm:$0xf]
    %v124 = vld [vmem:[%s1 + $0x174] sm:$0xf]
    %v125 = vld [vmem:[%s1 + $0x178] sm:$0xf]
    %v126 = vld [vmem:[%s1 + $0x17c] sm:$0xf]
    %v127 = vld [vmem:[%s1 + $0x180] sm:$0xf]
    %v128 = vld [vmem:[%s1 + $0x184] sm:$0xf]
    %v129 = vld [vmem:[%s1 + $0x188] sm:$0xf]
    %v130 = vld [vmem:[%s1 + $0x18c] sm:$0xf]
    %v131 = vld [vmem:[%s1 + $0x190] sm:$0xf]
    %v132 = vld [vmem:[%s1 + $0x194] sm:$0xf]
    %v133 = vld [vmem:[%s1 + $0x198] sm:$0xf]
    %v134 = vld [vmem:[%s1 + $0x19c] sm:$0xf]
    %v135 = vld [vmem:[%s1 + $0x1a0] sm:$0xf]
    %v136 = vld [vmem:[%s1 + $0x1a4] sm:$0xf]
    %v137 = vld [vmem:[%s1 + $0x1a8] sm:$0xf]
    %v138 = vld [vmem:[%s1 + $0x1ac] sm:$0xf]
    %v139 = vld [vmem:[%s1 + $0x1b0] sm:$0xf]
    %v140 = vld [vmem:[%s1 + $0x1b4] sm:$0xf]
    %v141 = vld [vmem:[%s1 + $0x1b8] sm:$0xf]
    %v142 = vld [vmem:[%s1 + $0x1bc] sm:$0xf]
    %v143 = vld [vmem:[%s1 + $0x1c0] sm:$0xf]
    %v144 = vld [vmem:[%s1 + $0x1c4] sm:$0xf]
    %v145 = vld [vmem:[%s1 + $0x1c8] sm:$0xf]
    %v146 = vld [vmem:[%s1 + $0x1cc] sm:$0xf]
    %v147 = vld [vmem:[%s1 + $0x1d0] sm:$0xf]
    %v148 = vld [vmem:[%s1 + $0x1d4] sm:$0xf]
    %v149 = vld [vmem:[%s1 + $0x1d8] sm:$0xf]
    %v150 = vld [vmem:[%s1 + $0x1dc] sm:$0xf]
    %v151 = vld [vmem:[%s1 + $0x1e0] sm:$0xf]
    %v152 = vld [vmem:[%s1 + $0x1e4] sm:$0xf]
    %v153 = vld [vmem:[%s1 + $0x1e8] sm:$0xf]
    %v154 = vld [vmem:[%s1 + $0x1ec] sm:$0xf]
    %v155 = vld [vmem:[%s1 + $0x1f0] sm:$0xf]
    %v156 = vld [vmem:[%s1 + $0x1f4] sm:$0xf]
    %v157 = vld [vmem:[%s1 + $0x1f8] sm:$0xf]
    %v158 = vld [vmem:[%s1 + $0x1fc] sm:$0xf]
    %v159 = vld [vmem:[%s1 + $0x200] sm:$0xf]
    %v160 = vld [vmem:[%s1 + $0x204] sm:$0xf]
    %v161 = vld [vmem:[%s1 + $0x208] sm:$0xf]
    %v162 = vld [vmem:[%s1 + $0x20c] sm:$0xf]
    %v163 = vld [vmem:[%s1 + $0x210] sm:$0xf]
    %v164 = vld [vmem:[%s1 + $0x214] sm:$0xf]
    %v165 = vld [vmem:[%s1 + $0x218] sm:$0xf]
    %v166 = vld [vmem:[%s1 + $0x21c] sm:$0xf]
    %v167 = vld [vmem:[%s1 + $0x220] sm:$0xf]
    %v168 = vld [vmem:[%s1 + $0x224] sm:$0xf]
    %v169 = vld [vmem:[%s1 + $0x228] sm:$0xf]
    %v170 = vld [vmem:[%s1 + $0x22c] sm:$0xf]
    %v171 = vld [vmem:[%s1 + $0x230] sm:$0xf]
    %v172 = vld [vmem:[%s1 + $0x234] sm:$0xf]
    %v173 = vld [vmem:[%s1 + $0x238] sm:$0xf]
    %v174 = vld [vmem:[%s1 + $0x23c] sm:$0xf]
    %v175 = vld [vmem:[%s1 + $0x240] sm:$0xf]
    %v176 = vld [vmem:[%s1 + $0x244] sm:$0xf]
    %v177 = vld [vmem:[%s1 + $0x248] sm:$0xf]
    %v178 = vld [vmem:[%s1 + $0x24c] sm:$0xf]
    %v179 = vld [vmem:[%s1 + $0x250] sm:$0xf]
    %v180 = vld [vmem:[%s1 + $0x254] sm:$0xf]
    %v181 = vld [vmem:[%s1 + $0x258] sm:$0xf]
    %v182 = vld [vmem:[%s1 + $0x25c] sm:$0xf]
    %v183 = vld [vmem:[%s1 + $0x260] sm:$0xf]
    %v184 = vld [vmem:[%s1 + $0x264] sm:$0xf]
    %v185 = vld [vmem:[%s1 + $0x268] sm:$0xf]
    %v186 = vld [vmem:[%s1 + $0x26c] sm:$0xf]
    %v187 = vld [vmem:[%s1 + $0x270] sm:$0xf]
    %v188 = vld [vmem:[%s1 + $0x274] sm:$0xf]
    %v189 = vld [vmem:[%s1 + $0x278] sm:$0xf]
    %v190 = vld [vmem:[%s1 + $0x27c] sm:$0xf]
    %v191 = vld [vmem:[%s1 + $0x280] sm:$0xf]
    %v192 = vld [vmem:[%s1 + $0x284] sm:$0xf]
    %v193 = vld [vmem:[%s1 + $0x288] sm:$0xf]
    %v194 = vld [vmem:[%s1 + $0x28c] sm:$0xf]
    %v195 = vld [vmem:[%s1 + $0x290] sm:$0xf]
    %v196 = vld [vmem:[%s1 + $0x294] sm:$0xf]
    %v197 = vld [vmem:[%s1 + $0x298] sm:$0xf]
    %v198 = vld [vmem:[%s1 + $0x29c] sm:$0xf]
    %v199 = vld [vmem:[%s1 + $0x2a0] sm:$0xf]
    %v200 = vld [vmem:[%s1 + $0x2a4] sm:$0xf]
    %v201 = vld [vmem:[%s1 + $0x2a8] sm:$0xf]
    %v202 = vld [vmem:[%s1 + $0x2ac] sm:$0xf]
    %v203 = vld [vmem:[%s1 + $0x2b0] sm:$0xf]
    %v204 = vld [vmem:[%s1 + $0x2b4] sm:$0xf]
    %v205 = vld [vmem:[%s1 + $0x2b8] sm:$0xf]
    %v206 = vld [vmem:[%s1 + $0x2bc] sm:$0xf]
    %v207 = vld [vmem:[%s1 + $0x2c0] sm:$0xf]
    %v208 = vld [vmem:[%s1 + $0x2c4] sm:$0xf]
    %v209 = vld [vmem:[%s1 + $0x2c8] sm:$0xf]
    %v210 = vld [vmem:[%s1 + $0x2cc] sm:$0xf]
    %v211 = vld [vmem:[%s1 + $0x2d0] sm:$0xf]
    %v212 = vld [vmem:[%s1 + $0x2d4] sm:$0xf]
    %v213 = vld [vmem:[%s1 + $0x2d8] sm:$0xf]
    %v214 = vld [vmem:[%s1 + $0x2dc] sm:$0xf]
    %v215 = vld [vmem:[%s1 + $0x2e0] sm:$0xf]
    %v216 = vld [vmem:[%s1 + $0x2e4] sm:$0xf]
    %v217 = vld [vmem:[%s1 + $0x2e8] sm:$0xf]
    %v218 = vld [vmem:[%s1 + $0x2ec] sm:$0xf]
    %v219 = vld [vmem:[%s1 + $0x2f0] sm:$0xf]
    %v220 = vld [vmem:[%s1 + $0x2f4] sm:$0xf]
    %v221 = vld [vmem:[%s1 + $0x2f8] sm:$0xf]
    %v222 = vld [vmem:[%s1 + $0x2fc] sm:$0xf]
    %v223 = vld [vmem:[%s1 + $0x300] sm:$0xf]
    %v224 = vld [vmem:[%s1 + $0x304] sm:$0xf]
    %v225 = vld [vmem:[%s1 + $0x308] sm:$0xf]
    %v226 = vld [vmem:[%s1 + $0x30c] sm:$0xf]
    %v227 = vld [vmem:[%s1 + $0x310] sm:$0xf]
    %v228 = vld [vmem:[%s1 + $0x314] sm:$0xf]
    %v229 = vld [vmem:[%s1 + $0x318] sm:$0xf]
    %v230 = vld [vmem:[%s1 + $0x31c] sm:$0xf]
    %v231 = vld [vmem:[%s1 + $0x320] sm:$0xf]
    %v232 = vld [vmem:[%s1 + $0x324] sm:$0xf]
    %v233 = vld [vmem:[%s1 + $0x328] sm:$0xf]
    %v234 = vld [vmem:[%s1 + $0x32c] sm:$0xf]
    %v235 = vld [vmem:[%s1 + $0x330] sm:$0xf]
    %v236 = vld [vmem:[%s1 + $0x334] sm:$0xf]
    %v237 = vld [vmem:[%s1 + $0x338] sm:$0xf]
    %v238 = vld [vmem:[%s1 + $0x33c] sm:$0xf]
    %v239 = vld [vmem:[%s1 + $0x340] sm:$0xf]
    %v240 = vld [vmem:[%s1 + $0x344] sm:$0xf]
    %v241 = vld [vmem:[%s1 + $0x348] sm:$0xf]
    %v242 = vld [vmem:[%s1 + $0x34c] sm:$0xf]
    %v243 = vld [vmem:[%s1 + $0x350] sm:$0xf]
    %v244 = vld [vmem:[%s1 + $0x354] sm:$0xf]
    %v245 = vld [vmem:[%s1 + $0x358] sm:$0xf]
    %v246 = vld [vmem:[%s1 + $0x35c] sm:$0xf]
    %v247 = vld [vmem:[%s1 + $0x360] sm:$0xf]
    %v248 = vld [vmem:[%s1 + $0x364] sm:$0xf]
    %v249 = vld [vmem:[%s1 + $0x368] sm:$0xf]
    %v250 = vld [vmem:[%s1 + $0x36c] sm:$0xf]
    %v251 = vld [vmem:[%s1 + $0x370] sm:$0xf]
    %v252 = vld [vmem:[%s1 + $0x374] sm:$0xf]
    %v253 = vld [vmem:[%s1 + $0x378] sm:$0xf]
    %v254 = vld [vmem:[%s1 + $0x37c] sm:$0xf]
    %v255 = vld [vmem:[%s1 + $0x380] sm:$0xf]
    %v256 = vld [vmem:[%s1 + $0x384] sm:$0xf]
    %v257 = vld [vmem:[%s1 + $0x388] sm:$0xf]
    %v258 = vld [vmem:[%s1 + $0x38c] sm:$0xf]
    %v259 = vld [vmem:[%s1 + $0x390] sm:$0xf]
    %v260 = vld [vmem:[%s1 + $0x394] sm:$0xf]
    %v261 = vld [vmem:[%s1 + $0x398] sm:$0xf]
    %v262 = vld [vmem:[%s1 + $0x39c] sm:$0xf]
    %v263 = vld [vmem:[%s1 + $0x3a0] sm:$0xf]
    %v264 = vld [vmem:[%s1 + $0x3a4] sm:$0xf]
    %v265 = vld [vmem:[%s1 + $0x3a8] sm:$0xf]
    %v266 = vld [vmem:[%s1 + $0x3ac] sm:$0xf]
    %v267 = vld [vmem:[%s1 + $0x3b0] sm:$0xf]
    %v268 = vld [vmem:[%s1 + $0x3b4] sm:$0xf]
    %v269 = vld [vmem:[%s1 + $0x3b8] sm:$0xf]
    %v270 = vld [vmem:[%s1 + $0x3bc] sm:$0xf]
    %v271 = vld [vmem:[%s1 + $0x3c0] sm:$0xf]
    %v272 = vld [vmem:[%s1 + $0x3c4] sm:$0xf]
    %v273 = vld [vmem:[%s1 + $0x3c8] sm:$0xf]
    %v274 = vld [vmem:[%s1 + $0x3cc] sm:$0xf]
    %v275 = vld [vmem:[%s1 + $0x3d0] sm:$0xf]
    %v276 = vld [vmem:[%s1 + $0x3d4] sm:$0xf]
    %v277 = vld [vmem:[%s1 + $0x3d8] sm:$0xf]
    %v278 = vld [vmem:[%s1 + $0x3dc] sm:$0xf]
    %v279 = vld [vmem:[%s1 + $0x3e0] sm:$0xf]
    %v280 = vld [vmem:[%s1 + $0x3e4] sm:$0xf]
    %v281 = vld [vmem:[%s1 + $0x3e8] sm:$0xf]
    %v282 = vld [vmem:[%s1 + $0x3ec] sm:$0xf]
    %v283 = vld [vmem:[%s1 + $0x3f0] sm:$0xf]
    %v284 = vld [vmem:[%s1 + $0x3f4] sm:$0xf]
    %v285 = vld [vmem:[%s1 + $0x3f8] sm:$0xf]
    %v286 = vld [vmem:[%s1 + $0x3fc] sm:$0xf]
    %v289 = vcombine.high %v29, %v29
    %v291 = vunpack.c.l.s4 1966171168
    %v292 = vunpack.c.0.s8 %v291
    %v293 = vlaneseq
    %v294 = vshrl.u32 %v293, 7
    %v295 = vsub.s32 %v292, %v294
    %v296 = vrot.slane %v29, %v295
    %v298 = vunpack.c.l.s4 1966171168
    %v299 = vunpack.c.0.s8 %v298
    %v300 = vlaneseq
    %v301 = vshrl.u32 %v300, 7
    %v302 = vsub.s32 %v299, %v301
    %v303 = vrot.slane %v289, %v302
    %v304 = vcombine.high %v296, %v296
    %v305 = vcombine.high %v303, %v303
    %v307 = vunpack.c.l.s4 1966171168
    %v308 = vunpack.c.0.s8 %v307
    %v309 = vlaneseq
    %v310 = vshrl.u32 %v309, 7
    %v311 = vsub.s32 %v308, %v310
    %v312 = vrot.slane %v296, %v311
    %v314 = vunpack.c.l.s4 1966171168
    %v315 = vunpack.c.0.s8 %v314
    %v316 = vlaneseq
    %v317 = vshrl.u32 %v316, 7
    %v318 = vsub.s32 %v315, %v317
    %v319 = vrot.slane %v303, %v318
    %v321 = vunpack.c.l.s4 1966171168
    %v322 = vunpack.c.0.s8 %v321
    %v323 = vlaneseq
    %v324 = vshrl.u32 %v323, 7
    %v325 = vsub.s32 %v322, %v324
    %v326 = vrot.slane %v304, %v325
    %v328 = vunpack.c.l.s4 1966171168
    %v329 = vunpack.c.0.s8 %v328
    %v330 = vlaneseq
    %v331 = vshrl.u32 %v330, 7
    %v332 = vsub.s32 %v329, %v331
    %v333 = vrot.slane %v305, %v332
    %v334 = vcombine.high %v312, %v312
    %v335 = vcombine.high %v319, %v319
    %v336 = vcombine.high %v326, %v326
    %v337 = vcombine.high %v333, %v333
    %v338 = vcombine.high %v30, %v30
    %v340 = vunpack.c.l.s4 1966171168
    %v341 = vunpack.c.0.s8 %v340
    %v342 = vlaneseq
    %v343 = vshrl.u32 %v342, 7
    %v344 = vsub.s32 %v341, %v343
    %v345 = vrot.slane %v30, %v344
    %v347 = vunpack.c.l.s4 1966171168
    %v348 = vunpack.c.0.s8 %v347
    %v349 = vlaneseq
    %v350 = vshrl.u32 %v349, 7
    %v351 = vsub.s32 %v348, %v350
    %v352 = vrot.slane %v338, %v351
    %v353 = vcombine.high %v345, %v345
    %v354 = vcombine.high %v352, %v352
    %v356 = vunpack.c.l.s4 1966171168
    %v357 = vunpack.c.0.s8 %v356
    %v358 = vlaneseq
    %v359 = vshrl.u32 %v358, 7
    %v360 = vsub.s32 %v357, %v359
    %v361 = vrot.slane %v345, %v360
    %v363 = vunpack.c.l.s4 1966171168
    %v364 = vunpack.c.0.s8 %v363
    %v365 = vlaneseq
    %v366 = vshrl.u32 %v365, 7
    %v367 = vsub.s32 %v364, %v366
    %v368 = vrot.slane %v352, %v367
    %v370 = vunpack.c.l.s4 1966171168
    %v371 = vunpack.c.0.s8 %v370
    %v372 = vlaneseq
    %v373 = vshrl.u32 %v372, 7
    %v374 = vsub.s32 %v371, %v373
    %v375 = vrot.slane %v353, %v374
    %v377 = vunpack.c.l.s4 1966171168
    %v378 = vunpack.c.0.s8 %v377
    %v379 = vlaneseq
    %v380 = vshrl.u32 %v379, 7
    %v381 = vsub.s32 %v378, %v380
    %v382 = vrot.slane %v354, %v381
    %v383 = vcombine.high %v361, %v361
    %v384 = vcombine.high %v368, %v368
    %v385 = vcombine.high %v375, %v375
    %v386 = vcombine.high %v382, %v382
    %v659 = vunpack.c.l.b16 %v31
    %v660 = vunpack.c.l.b16 %v32
    %v661 = vunpack.c.l.b16 %v33
    %v662 = vunpack.c.l.b16 %v34
    %v663 = vunpack.c.l.b16 %v35
    %v664 = vunpack.c.l.b16 %v36
    %v665 = vunpack.c.l.b16 %v37
    %v666 = vunpack.c.l.b16 %v38
    %v667 = vunpack.c.l.b16 %v39
    %v668 = vunpack.c.l.b16 %v40
    %v669 = vunpack.c.l.b16 %v41
    %v670 = vunpack.c.l.b16 %v42
    %v671 = vunpack.c.l.b16 %v43
    %v672 = vunpack.c.l.b16 %v44
    %v673 = vunpack.c.l.b16 %v45
    %v674 = vunpack.c.l.b16 %v46
    %v675 = vunpack.c.l.b16 %v47
    %v676 = vunpack.c.l.b16 %v48
    %v677 = vunpack.c.l.b16 %v49
    %v678 = vunpack.c.l.b16 %v50
    %v679 = vunpack.c.l.b16 %v51
    %v680 = vunpack.c.l.b16 %v52
    %v681 = vunpack.c.l.b16 %v53
    %v682 = vunpack.c.l.b16 %v54
    %v683 = vunpack.c.l.b16 %v55
    %v684 = vunpack.c.l.b16 %v56
    %v685 = vunpack.c.l.b16 %v57
    %v686 = vunpack.c.l.b16 %v58
    %v687 = vunpack.c.l.b16 %v59
    %v688 = vunpack.c.l.b16 %v60
    %v689 = vunpack.c.l.b16 %v61
    %v690 = vunpack.c.l.b16 %v62
    %v691 = vunpack.c.l.b16 %v63
    %v692 = vunpack.c.l.b16 %v64
    %v693 = vunpack.c.l.b16 %v65
    %v694 = vunpack.c.l.b16 %v66
    %v695 = vunpack.c.l.b16 %v67
    %v696 = vunpack.c.l.b16 %v68
    %v697 = vunpack.c.l.b16 %v69
    %v698 = vunpack.c.l.b16 %v70
    %v699 = vunpack.c.l.b16 %v71
    %v700 = vunpack.c.l.b16 %v72
    %v701 = vunpack.c.l.b16 %v73
    %v702 = vunpack.c.l.b16 %v74
    %v703 = vunpack.c.l.b16 %v75
    %v704 = vunpack.c.l.b16 %v76
    %v705 = vunpack.c.l.b16 %v77
    %v706 = vunpack.c.l.b16 %v78
    %v707 = vunpack.c.l.b16 %v79
    %v708 = vunpack.c.l.b16 %v80
    %v709 = vunpack.c.l.b16 %v81
    %v710 = vunpack.c.l.b16 %v82
    %v711 = vunpack.c.l.b16 %v83
    %v712 = vunpack.c.l.b16 %v84
    %v713 = vunpack.c.l.b16 %v85
    %v714 = vunpack.c.l.b16 %v86
    %v715 = vunpack.c.l.b16 %v87
    %v716 = vunpack.c.l.b16 %v88
    %v717 = vunpack.c.l.b16 %v89
    %v718 = vunpack.c.l.b16 %v90
    %v719 = vunpack.c.l.b16 %v91
    %v720 = vunpack.c.l.b16 %v92
    %v721 = vunpack.c.l.b16 %v93
    %v722 = vunpack.c.l.b16 %v94
    %v723 = vunpack.c.l.b16 %v95
    %v724 = vunpack.c.l.b16 %v96
    %v725 = vunpack.c.l.b16 %v97
    %v726 = vunpack.c.l.b16 %v98
    %v727 = vunpack.c.l.b16 %v99
    %v728 = vunpack.c.l.b16 %v100
    %v729 = vunpack.c.l.b16 %v101
    %v730 = vunpack.c.l.b16 %v102
    %v731 = vunpack.c.l.b16 %v103
    %v732 = vunpack.c.l.b16 %v104
    %v733 = vunpack.c.l.b16 %v105
    %v734 = vunpack.c.l.b16 %v106
    %v735 = vunpack.c.l.b16 %v107
    %v736 = vunpack.c.l.b16 %v108
    %v737 = vunpack.c.l.b16 %v109
    %v738 = vunpack.c.l.b16 %v110
    %v739 = vunpack.c.l.b16 %v111
    %v740 = vunpack.c.l.b16 %v112
    %v741 = vunpack.c.l.b16 %v113
    %v742 = vunpack.c.l.b16 %v114
    %v743 = vunpack.c.l.b16 %v115
    %v744 = vunpack.c.l.b16 %v116
    %v745 = vunpack.c.l.b16 %v117
    %v746 = vunpack.c.l.b16 %v118
    %v747 = vunpack.c.l.b16 %v119
    %v748 = vunpack.c.l.b16 %v120
    %v749 = vunpack.c.l.b16 %v121
    %v750 = vunpack.c.l.b16 %v122
    %v751 = vunpack.c.l.b16 %v123
    %v752 = vunpack.c.l.b16 %v124
    %v753 = vunpack.c.l.b16 %v125
    %v754 = vunpack.c.l.b16 %v126
    %v755 = vunpack.c.l.b16 %v127
    %v756 = vunpack.c.l.b16 %v128
    %v757 = vunpack.c.l.b16 %v129
    %v758 = vunpack.c.l.b16 %v130
    %v759 = vunpack.c.l.b16 %v131
    %v760 = vunpack.c.l.b16 %v132
    %v761 = vunpack.c.l.b16 %v133
    %v762 = vunpack.c.l.b16 %v134
    %v763 = vunpack.c.l.b16 %v135
    %v764 = vunpack.c.l.b16 %v136
    %v765 = vunpack.c.l.b16 %v137
    %v766 = vunpack.c.l.b16 %v138
    %v767 = vunpack.c.l.b16 %v139
    %v768 = vunpack.c.l.b16 %v140
    %v769 = vunpack.c.l.b16 %v141
    %v770 = vunpack.c.l.b16 %v142
    %v771 = vunpack.c.l.b16 %v143
    %v772 = vunpack.c.l.b16 %v144
    %v773 = vunpack.c.l.b16 %v145
    %v774 = vunpack.c.l.b16 %v146
    %v775 = vunpack.c.l.b16 %v147
    %v776 = vunpack.c.l.b16 %v148
    %v777 = vunpack.c.l.b16 %v149
    %v778 = vunpack.c.l.b16 %v150
    %v779 = vunpack.c.l.b16 %v151
    %v780 = vunpack.c.l.b16 %v152
    %v781 = vunpack.c.l.b16 %v153
    %v782 = vunpack.c.l.b16 %v154
    %v783 = vunpack.c.l.b16 %v155
    %v784 = vunpack.c.l.b16 %v156
    %v785 = vunpack.c.l.b16 %v157
    %v786 = vunpack.c.l.b16 %v158
    %v787 = vunpack.c.l.b16 %v159
    %v788 = vunpack.c.l.b16 %v160
    %v789 = vunpack.c.l.b16 %v161
    %v790 = vunpack.c.l.b16 %v162
    %v791 = vunpack.c.l.b16 %v163
    %v792 = vunpack.c.l.b16 %v164
    %v793 = vunpack.c.l.b16 %v165
    %v794 = vunpack.c.l.b16 %v166
    %v795 = vunpack.c.l.b16 %v167
    %v796 = vunpack.c.l.b16 %v168
    %v797 = vunpack.c.l.b16 %v169
    %v798 = vunpack.c.l.b16 %v170
    %v799 = vunpack.c.l.b16 %v171
    %v800 = vunpack.c.l.b16 %v172
    %v801 = vunpack.c.l.b16 %v173
    %v802 = vunpack.c.l.b16 %v174
    %v803 = vunpack.c.l.b16 %v175
    %v804 = vunpack.c.l.b16 %v176
    %v805 = vunpack.c.l.b16 %v177
    %v806 = vunpack.c.l.b16 %v178
    %v807 = vunpack.c.l.b16 %v179
    %v808 = vunpack.c.l.b16 %v180
    %v809 = vunpack.c.l.b16 %v181
    %v810 = vunpack.c.l.b16 %v182
    %v811 = vunpack.c.l.b16 %v183
    %v812 = vunpack.c.l.b16 %v184
    %v813 = vunpack.c.l.b16 %v185
    %v814 = vunpack.c.l.b16 %v186
    %v815 = vunpack.c.l.b16 %v187
    %v816 = vunpack.c.l.b16 %v188
    %v817 = vunpack.c.l.b16 %v189
    %v818 = vunpack.c.l.b16 %v190
    %v819 = vunpack.c.l.b16 %v191
    %v820 = vunpack.c.l.b16 %v192
    %v821 = vunpack.c.l.b16 %v193
    %v822 = vunpack.c.l.b16 %v194
    %v823 = vunpack.c.l.b16 %v195
    %v824 = vunpack.c.l.b16 %v196
    %v825 = vunpack.c.l.b16 %v197
    %v826 = vunpack.c.l.b16 %v198
    %v827 = vunpack.c.l.b16 %v199
    %v828 = vunpack.c.l.b16 %v200
    %v829 = vunpack.c.l.b16 %v201
    %v830 = vunpack.c.l.b16 %v202
    %v831 = vunpack.c.l.b16 %v203
    %v832 = vunpack.c.l.b16 %v204
    %v833 = vunpack.c.l.b16 %v205
    %v834 = vunpack.c.l.b16 %v206
    %v835 = vunpack.c.l.b16 %v207
    %v836 = vunpack.c.l.b16 %v208
    %v837 = vunpack.c.l.b16 %v209
    %v838 = vunpack.c.l.b16 %v210
    %v839 = vunpack.c.l.b16 %v211
    %v840 = vunpack.c.l.b16 %v212
    %v841 = vunpack.c.l.b16 %v213
    %v842 = vunpack.c.l.b16 %v214
    %v843 = vunpack.c.l.b16 %v215
    %v844 = vunpack.c.l.b16 %v216
    %v845 = vunpack.c.l.b16 %v217
    %v846 = vunpack.c.l.b16 %v218
    %v847 = vunpack.c.l.b16 %v219
    %v848 = vunpack.c.l.b16 %v220
    %v849 = vunpack.c.l.b16 %v221
    %v850 = vunpack.c.l.b16 %v222
    %v851 = vunpack.c.l.b16 %v223
    %v852 = vunpack.c.l.b16 %v224
    %v853 = vunpack.c.l.b16 %v225
    %v854 = vunpack.c.l.b16 %v226
    %v855 = vunpack.c.l.b16 %v227
    %v856 = vunpack.c.l.b16 %v228
    %v857 = vunpack.c.l.b16 %v229
    %v858 = vunpack.c.l.b16 %v230
    %v859 = vunpack.c.l.b16 %v231
    %v860 = vunpack.c.l.b16 %v232
    %v861 = vunpack.c.l.b16 %v233
    %v862 = vunpack.c.l.b16 %v234
    %v863 = vunpack.c.l.b16 %v235
    %v864 = vunpack.c.l.b16 %v236
    %v865 = vunpack.c.l.b16 %v237
    %v866 = vunpack.c.l.b16 %v238
    %v867 = vunpack.c.l.b16 %v239
    %v868 = vunpack.c.l.b16 %v240
    %v869 = vunpack.c.l.b16 %v241
    %v870 = vunpack.c.l.b16 %v242
    %v871 = vunpack.c.l.b16 %v243
    %v872 = vunpack.c.l.b16 %v244
    %v873 = vunpack.c.l.b16 %v245
    %v874 = vunpack.c.l.b16 %v246
    %v875 = vunpack.c.l.b16 %v247
    %v876 = vunpack.c.l.b16 %v248
    %v877 = vunpack.c.l.b16 %v249
    %v878 = vunpack.c.l.b16 %v250
    %v879 = vunpack.c.l.b16 %v251
    %v880 = vunpack.c.l.b16 %v252
    %v881 = vunpack.c.l.b16 %v253
    %v882 = vunpack.c.l.b16 %v254
    %v883 = vunpack.c.l.b16 %v255
    %v884 = vunpack.c.l.b16 %v256
    %v885 = vunpack.c.l.b16 %v257
    %v886 = vunpack.c.l.b16 %v258
    %v887 = vunpack.c.l.b16 %v259
    %v888 = vunpack.c.l.b16 %v260
    %v889 = vunpack.c.l.b16 %v261
    %v890 = vunpack.c.l.b16 %v262
    %v891 = vunpack.c.l.b16 %v263
    %v892 = vunpack.c.l.b16 %v264
    %v893 = vunpack.c.l.b16 %v265
    %v894 = vunpack.c.l.b16 %v266
    %v895 = vunpack.c.l.b16 %v267
    %v896 = vunpack.c.l.b16 %v268
    %v897 = vunpack.c.l.b16 %v269
    %v898 = vunpack.c.l.b16 %v270
    %v899 = vunpack.c.l.b16 %v271
    %v900 = vunpack.c.l.b16 %v272
    %v901 = vunpack.c.l.b16 %v273
    %v902 = vunpack.c.l.b16 %v274
    %v903 = vunpack.c.l.b16 %v275
    %v904 = vunpack.c.l.b16 %v276
    %v905 = vunpack.c.l.b16 %v277
    %v906 = vunpack.c.l.b16 %v278
    %v907 = vunpack.c.l.b16 %v279
    %v908 = vunpack.c.l.b16 %v280
    %v909 = vunpack.c.l.b16 %v281
    %v910 = vunpack.c.l.b16 %v282
    %v911 = vunpack.c.l.b16 %v283
    %v912 = vunpack.c.l.b16 %v284
    %v913 = vunpack.c.l.b16 %v285
    %v914 = vunpack.c.l.b16 %v286
    %v915 = vpack.c.b16 %v660, %v659
    %v916 = vpack.c.b16 %v662, %v661
    %v917 = vpack.c.b16 %v664, %v663
    %v918 = vpack.c.b16 %v666, %v665
    %v919 = vpack.c.b16 %v668, %v667
    %v920 = vpack.c.b16 %v670, %v669
    %v921 = vpack.c.b16 %v672, %v671
    %v922 = vpack.c.b16 %v674, %v673
    %v923 = vpack.c.b16 %v676, %v675
    %v924 = vpack.c.b16 %v678, %v677
    %v925 = vpack.c.b16 %v680, %v679
    %v926 = vpack.c.b16 %v682, %v681
    %v927 = vpack.c.b16 %v684, %v683
    %v928 = vpack.c.b16 %v686, %v685
    %v929 = vpack.c.b16 %v688, %v687
    %v930 = vpack.c.b16 %v690, %v689
    %v931 = vpack.c.b16 %v692, %v691
    %v932 = vpack.c.b16 %v694, %v693
    %v933 = vpack.c.b16 %v696, %v695
    %v934 = vpack.c.b16 %v698, %v697
    %v935 = vpack.c.b16 %v700, %v699
    %v936 = vpack.c.b16 %v702, %v701
    %v937 = vpack.c.b16 %v704, %v703
    %v938 = vpack.c.b16 %v706, %v705
    %v939 = vpack.c.b16 %v708, %v707
    %v940 = vpack.c.b16 %v710, %v709
    %v941 = vpack.c.b16 %v712, %v711
    %v942 = vpack.c.b16 %v714, %v713
    %v943 = vpack.c.b16 %v716, %v715
    %v944 = vpack.c.b16 %v718, %v717
    %v945 = vpack.c.b16 %v720, %v719
    %v946 = vpack.c.b16 %v722, %v721
    %v947 = vpack.c.b16 %v724, %v723
    %v948 = vpack.c.b16 %v726, %v725
    %v949 = vpack.c.b16 %v728, %v727
    %v950 = vpack.c.b16 %v730, %v729
    %v951 = vpack.c.b16 %v732, %v731
    %v952 = vpack.c.b16 %v734, %v733
    %v953 = vpack.c.b16 %v736, %v735
    %v954 = vpack.c.b16 %v738, %v737
    %v955 = vpack.c.b16 %v740, %v739
    %v956 = vpack.c.b16 %v742, %v741
    %v957 = vpack.c.b16 %v744, %v743
    %v958 = vpack.c.b16 %v746, %v745
    %v959 = vpack.c.b16 %v748, %v747
    %v960 = vpack.c.b16 %v750, %v749
    %v961 = vpack.c.b16 %v752, %v751
    %v962 = vpack.c.b16 %v754, %v753
    %v963 = vpack.c.b16 %v756, %v755
    %v964 = vpack.c.b16 %v758, %v757
    %v965 = vpack.c.b16 %v760, %v759
    %v966 = vpack.c.b16 %v762, %v761
    %v967 = vpack.c.b16 %v764, %v763
    %v968 = vpack.c.b16 %v766, %v765
    %v969 = vpack.c.b16 %v768, %v767
    %v970 = vpack.c.b16 %v770, %v769
    %v971 = vpack.c.b16 %v772, %v771
    %v972 = vpack.c.b16 %v774, %v773
    %v973 = vpack.c.b16 %v776, %v775
    %v974 = vpack.c.b16 %v778, %v777
    %v975 = vpack.c.b16 %v780, %v779
    %v976 = vpack.c.b16 %v782, %v781
    %v977 = vpack.c.b16 %v784, %v783
    %v978 = vpack.c.b16 %v786, %v785
    %v979 = vpack.c.b16 %v788, %v787
    %v980 = vpack.c.b16 %v790, %v789
    %v981 = vpack.c.b16 %v792, %v791
    %v982 = vpack.c.b16 %v794, %v793
    %v983 = vpack.c.b16 %v796, %v795
    %v984 = vpack.c.b16 %v798, %v797
    %v985 = vpack.c.b16 %v800, %v799
    %v986 = vpack.c.b16 %v802, %v801
    %v987 = vpack.c.b16 %v804, %v803
    %v988 = vpack.c.b16 %v806, %v805
    %v989 = vpack.c.b16 %v808, %v807
    %v990 = vpack.c.b16 %v810, %v809
    %v991 = vpack.c.b16 %v812, %v811
    %v992 = vpack.c.b16 %v814, %v813
    %v993 = vpack.c.b16 %v816, %v815
    %v994 = vpack.c.b16 %v818, %v817
    %v995 = vpack.c.b16 %v820, %v819
    %v996 = vpack.c.b16 %v822, %v821
    %v997 = vpack.c.b16 %v824, %v823
    %v998 = vpack.c.b16 %v826, %v825
    %v999 = vpack.c.b16 %v828, %v827
    %v1000 = vpack.c.b16 %v830, %v829
    %v1001 = vpack.c.b16 %v832, %v831
    %v1002 = vpack.c.b16 %v834, %v833
    %v1003 = vpack.c.b16 %v836, %v835
    %v1004 = vpack.c.b16 %v838, %v837
    %v1005 = vpack.c.b16 %v840, %v839
    %v1006 = vpack.c.b16 %v842, %v841
    %v1007 = vpack.c.b16 %v844, %v843
    %v1008 = vpack.c.b16 %v846, %v845
    %v1009 = vpack.c.b16 %v848, %v847
    %v1010 = vpack.c.b16 %v850, %v849
    %v1011 = vpack.c.b16 %v852, %v851
    %v1012 = vpack.c.b16 %v854, %v853
    %v1013 = vpack.c.b16 %v856, %v855
    %v1014 = vpack.c.b16 %v858, %v857
    %v1015 = vpack.c.b16 %v860, %v859
    %v1016 = vpack.c.b16 %v862, %v861
    %v1017 = vpack.c.b16 %v864, %v863
    %v1018 = vpack.c.b16 %v866, %v865
    %v1019 = vpack.c.b16 %v868, %v867
    %v1020 = vpack.c.b16 %v870, %v869
    %v1021 = vpack.c.b16 %v872, %v871
    %v1022 = vpack.c.b16 %v874, %v873
    %v1023 = vpack.c.b16 %v876, %v875
    %v1024 = vpack.c.b16 %v878, %v877
    %v1025 = vpack.c.b16 %v880, %v879
    %v1026 = vpack.c.b16 %v882, %v881
    %v1027 = vpack.c.b16 %v884, %v883
    %v1028 = vpack.c.b16 %v886, %v885
    %v1029 = vpack.c.b16 %v888, %v887
    %v1030 = vpack.c.b16 %v890, %v889
    %v1031 = vpack.c.b16 %v892, %v891
    %v1032 = vpack.c.b16 %v894, %v893
    %v1033 = vpack.c.b16 %v896, %v895
    %v1034 = vpack.c.b16 %v898, %v897
    %v1035 = vpack.c.b16 %v900, %v899
    %v1036 = vpack.c.b16 %v902, %v901
    %v1037 = vpack.c.b16 %v904, %v903
    %v1038 = vpack.c.b16 %v906, %v905
    %v1039 = vpack.c.b16 %v908, %v907
    %v1040 = vpack.c.b16 %v910, %v909
    %v1041 = vpack.c.b16 %v912, %v911
    %v1042 = vpack.c.b16 %v914, %v913
    %1171 = vmatprep.subr.bf16.mxu0 0
    %1172 = vmatpush1.bf16.msra.mxu0 %v915
    %1173 = vmatprep.subr.bf16.mxu0 0
    %1174 = vmatpush1.bf16.msra.mxu0 %v916
    %1175 = vmatprep.subr.bf16.mxu0 0
    %1176 = vmatpush1.bf16.msra.mxu0 %v917
    %1177 = vmatprep.subr.bf16.mxu0 0
    %1178 = vmatpush1.bf16.msra.mxu0 %v918
    %1179 = vmatprep.subr.bf16.mxu0 0
    %1180 = vmatpush1.bf16.msra.mxu0 %v919
    %1181 = vmatprep.subr.bf16.mxu0 0
    %1182 = vmatpush1.bf16.msra.mxu0 %v920
    %1183 = vmatprep.subr.bf16.mxu0 0
    %1184 = vmatpush1.bf16.msra.mxu0 %v921
    %1185 = vmatprep.subr.bf16.mxu0 0
    %1186 = vmatpush1.bf16.msra.mxu0 %v922
    %1187 = vmatprep.subr.bf16.mxu0 0
    %1188 = vmatpush1.bf16.msra.mxu0 %v923
    %1189 = vmatprep.subr.bf16.mxu0 0
    %1190 = vmatpush1.bf16.msra.mxu0 %v924
    %1191 = vmatprep.subr.bf16.mxu0 0
    %1192 = vmatpush1.bf16.msra.mxu0 %v925
    %1193 = vmatprep.subr.bf16.mxu0 0
    %1194 = vmatpush1.bf16.msra.mxu0 %v926
    %1195 = vmatprep.subr.bf16.mxu0 0
    %1196 = vmatpush1.bf16.msra.mxu0 %v927
    %1197 = vmatprep.subr.bf16.mxu0 0
    %1198 = vmatpush1.bf16.msra.mxu0 %v928
    %1199 = vmatprep.subr.bf16.mxu0 0
    %1200 = vmatpush1.bf16.msra.mxu0 %v929
    %1201 = vmatprep.subr.bf16.mxu0 0
    %1202 = vmatpush1.bf16.msra.mxu0 %v930
    %1203 = vmatprep.mubr.bf16.mxu0 %v326
    %1204 = vmatmul.mubr.bf16.gmra.mrb[0].mxu0 %v312
    %v1205 = vpop.f32.mrb[0].mxu0
    %v1206 = vadd.f32 0.0, %v1205
    %v1207 = vpop.f32.mrb[0].mxu0
    %v1208 = vpop.f32.mrb[0].mxu0
    %v1209 = vpop.f32.mrb[0].mxu0
    %1210 = vdwg.mxu0
    %1211 = vmatprep.subr.bf16.mxu0 0
    %1212 = vmatpush1.bf16.msra.mxu0 %v931
    %1213 = vmatprep.subr.bf16.mxu0 0
    %1214 = vmatpush1.bf16.msra.mxu0 %v932
    %1215 = vmatprep.subr.bf16.mxu0 0
    %1216 = vmatpush1.bf16.msra.mxu0 %v933
    %1217 = vmatprep.subr.bf16.mxu0 0
    %1218 = vmatpush1.bf16.msra.mxu0 %v934
    %1219 = vmatprep.subr.bf16.mxu0 0
    %1220 = vmatpush1.bf16.msra.mxu0 %v935
    %1221 = vmatprep.subr.bf16.mxu0 0
    %1222 = vmatpush1.bf16.msra.mxu0 %v936
    %1223 = vmatprep.subr.bf16.mxu0 0
    %1224 = vmatpush1.bf16.msra.mxu0 %v937
    %1225 = vmatprep.subr.bf16.mxu0 0
    %1226 = vmatpush1.bf16.msra.mxu0 %v938
    %1227 = vmatprep.subr.bf16.mxu0 0
    %1228 = vmatpush1.bf16.msra.mxu0 %v939
    %1229 = vmatprep.subr.bf16.mxu0 0
    %1230 = vmatpush1.bf16.msra.mxu0 %v940
    %1231 = vmatprep.subr.bf16.mxu0 0
    %1232 = vmatpush1.bf16.msra.mxu0 %v941
    %1233 = vmatprep.subr.bf16.mxu0 0
    %1234 = vmatpush1.bf16.msra.mxu0 %v942
    %1235 = vmatprep.subr.bf16.mxu0 0
    %1236 = vmatpush1.bf16.msra.mxu0 %v943
    %1237 = vmatprep.subr.bf16.mxu0 0
    %1238 = vmatpush1.bf16.msra.mxu0 %v944
    %1239 = vmatprep.subr.bf16.mxu0 0
    %1240 = vmatpush1.bf16.msra.mxu0 %v945
    %1241 = vmatprep.subr.bf16.mxu0 0
    %1242 = vmatpush1.bf16.msra.mxu0 %v946
    %1243 = vmatprep.mubr.bf16.mxu0 %v336
    %1244 = vmatmul.mubr.bf16.gmra.mrb[0].mxu0 %v334
    %v1245 = vpop.f32.mrb[0].mxu0
    %v1246 = vadd.f32 %v1206, %v1245
    %v1247 = vpop.f32.mrb[0].mxu0
    %v1248 = vpop.f32.mrb[0].mxu0
    %v1249 = vpop.f32.mrb[0].mxu0
    %1250 = vdwg.mxu0
    %1251 = vmatprep.subr.bf16.mxu0 0
    %1252 = vmatpush1.bf16.msra.mxu0 %v947
    %1253 = vmatprep.subr.bf16.mxu0 0
    %1254 = vmatpush1.bf16.msra.mxu0 %v948
    %1255 = vmatprep.subr.bf16.mxu0 0
    %1256 = vmatpush1.bf16.msra.mxu0 %v949
    %1257 = vmatprep.subr.bf16.mxu0 0
    %1258 = vmatpush1.bf16.msra.mxu0 %v950
    %1259 = vmatprep.subr.bf16.mxu0 0
    %1260 = vmatpush1.bf16.msra.mxu0 %v951
    %1261 = vmatprep.subr.bf16.mxu0 0
    %1262 = vmatpush1.bf16.msra.mxu0 %v952
    %1263 = vmatprep.subr.bf16.mxu0 0
    %1264 = vmatpush1.bf16.msra.mxu0 %v953
    %1265 = vmatprep.subr.bf16.mxu0 0
    %1266 = vmatpush1.bf16.msra.mxu0 %v954
    %1267 = vmatprep.subr.bf16.mxu0 0
    %1268 = vmatpush1.bf16.msra.mxu0 %v955
    %1269 = vmatprep.subr.bf16.mxu0 0
    %1270 = vmatpush1.bf16.msra.mxu0 %v956
    %1271 = vmatprep.subr.bf16.mxu0 0
    %1272 = vmatpush1.bf16.msra.mxu0 %v957
    %1273 = vmatprep.subr.bf16.mxu0 0
    %1274 = vmatpush1.bf16.msra.mxu0 %v958
    %1275 = vmatprep.subr.bf16.mxu0 0
    %1276 = vmatpush1.bf16.msra.mxu0 %v959
    %1277 = vmatprep.subr.bf16.mxu0 0
    %1278 = vmatpush1.bf16.msra.mxu0 %v960
    %1279 = vmatprep.subr.bf16.mxu0 0
    %1280 = vmatpush1.bf16.msra.mxu0 %v961
    %1281 = vmatprep.subr.bf16.mxu0 0
    %1282 = vmatpush1.bf16.msra.mxu0 %v962
    %1283 = vmatprep.mubr.bf16.mxu0 %v333
    %1284 = vmatmul.mubr.bf16.gmra.mrb[0].mxu0 %v319
    %v1285 = vpop.f32.mrb[0].mxu0
    %v1286 = vadd.f32 %v1246, %v1285
    %v1287 = vpop.f32.mrb[0].mxu0
    %v1288 = vpop.f32.mrb[0].mxu0
    %v1289 = vpop.f32.mrb[0].mxu0
    %1290 = vdwg.mxu0
    %1291 = vmatprep.subr.bf16.mxu0 0
    %1292 = vmatpush1.bf16.msra.mxu0 %v963
    %1293 = vmatprep.subr.bf16.mxu0 0
    %1294 = vmatpush1.bf16.msra.mxu0 %v964
    %1295 = vmatprep.subr.bf16.mxu0 0
    %1296 = vmatpush1.bf16.msra.mxu0 %v965
    %1297 = vmatprep.subr.bf16.mxu0 0
    %1298 = vmatpush1.bf16.msra.mxu0 %v966
    %1299 = vmatprep.subr.bf16.mxu0 0
    %1300 = vmatpush1.bf16.msra.mxu0 %v967
    %1301 = vmatprep.subr.bf16.mxu0 0
    %1302 = vmatpush1.bf16.msra.mxu0 %v968
    %1303 = vmatprep.subr.bf16.mxu0 0
    %1304 = vmatpush1.bf16.msra.mxu0 %v969
    %1305 = vmatprep.subr.bf16.mxu0 0
    %1306 = vmatpush1.bf16.msra.mxu0 %v970
    %1307 = vmatprep.subr.bf16.mxu0 0
    %1308 = vmatpush1.bf16.msra.mxu0 %v971
    %1309 = vmatprep.subr.bf16.mxu0 0
    %1310 = vmatpush1.bf16.msra.mxu0 %v972
    %1311 = vmatprep.subr.bf16.mxu0 0
    %1312 = vmatpush1.bf16.msra.mxu0 %v973
    %1313 = vmatprep.subr.bf16.mxu0 0
    %1314 = vmatpush1.bf16.msra.mxu0 %v974
    %1315 = vmatprep.subr.bf16.mxu0 0
    %1316 = vmatpush1.bf16.msra.mxu0 %v975
    %1317 = vmatprep.subr.bf16.mxu0 0
    %1318 = vmatpush1.bf16.msra.mxu0 %v976
    %1319 = vmatprep.subr.bf16.mxu0 0
    %1320 = vmatpush1.bf16.msra.mxu0 %v977
    %1321 = vmatprep.subr.bf16.mxu0 0
    %1322 = vmatpush1.bf16.msra.mxu0 %v978
    %1323 = vmatprep.mubr.bf16.mxu0 %v337
    %1324 = vmatmul.mubr.bf16.gmra.mrb[0].mxu0 %v335
    %v1325 = vpop.f32.mrb[0].mxu0
    %v1326 = vadd.f32 %v1286, %v1325
    %v1327 = vpop.f32.mrb[0].mxu0
    %v1328 = vpop.f32.mrb[0].mxu0
    %v1329 = vpop.f32.mrb[0].mxu0
    %1330 = vdwg.mxu0
    %1331 = vmatprep.subr.bf16.mxu0 0
    %1332 = vmatpush1.bf16.msra.mxu0 %v979
    %1333 = vmatprep.subr.bf16.mxu0 0
    %1334 = vmatpush1.bf16.msra.mxu0 %v980
    %1335 = vmatprep.subr.bf16.mxu0 0
    %1336 = vmatpush1.bf16.msra.mxu0 %v981
    %1337 = vmatprep.subr.bf16.mxu0 0
    %1338 = vmatpush1.bf16.msra.mxu0 %v982
    %1339 = vmatprep.subr.bf16.mxu0 0
    %1340 = vmatpush1.bf16.msra.mxu0 %v983
    %1341 = vmatprep.subr.bf16.mxu0 0
    %1342 = vmatpush1.bf16.msra.mxu0 %v984
    %1343 = vmatprep.subr.bf16.mxu0 0
    %1344 = vmatpush1.bf16.msra.mxu0 %v985
    %1345 = vmatprep.subr.bf16.mxu0 0
    %1346 = vmatpush1.bf16.msra.mxu0 %v986
    %1347 = vmatprep.subr.bf16.mxu0 0
    %1348 = vmatpush1.bf16.msra.mxu0 %v987
    %1349 = vmatprep.subr.bf16.mxu0 0
    %1350 = vmatpush1.bf16.msra.mxu0 %v988
    %1351 = vmatprep.subr.bf16.mxu0 0
    %1352 = vmatpush1.bf16.msra.mxu0 %v989
    %1353 = vmatprep.subr.bf16.mxu0 0
    %1354 = vmatpush1.bf16.msra.mxu0 %v990
    %1355 = vmatprep.subr.bf16.mxu0 0
    %1356 = vmatpush1.bf16.msra.mxu0 %v991
    %1357 = vmatprep.subr.bf16.mxu0 0
    %1358 = vmatpush1.bf16.msra.mxu0 %v992
    %1359 = vmatprep.subr.bf16.mxu0 0
    %1360 = vmatpush1.bf16.msra.mxu0 %v993
    %1361 = vmatprep.subr.bf16.mxu0 0
    %1362 = vmatpush1.bf16.msra.mxu0 %v994
    %1363 = vmatprep.mubr.bf16.mxu0 %v375
    %1364 = vmatmul.mubr.bf16.gmra.mrb[0].mxu0 %v361
    %v1365 = vpop.f32.mrb[0].mxu0
    %v1366 = vadd.f32 %v1326, %v1365
    %v1367 = vpop.f32.mrb[0].mxu0
    %v1368 = vpop.f32.mrb[0].mxu0
    %v1369 = vpop.f32.mrb[0].mxu0
    %1370 = vdwg.mxu0
    %1371 = vmatprep.subr.bf16.mxu0 0
    %1372 = vmatpush1.bf16.msra.mxu0 %v995
    %1373 = vmatprep.subr.bf16.mxu0 0
    %1374 = vmatpush1.bf16.msra.mxu0 %v996
    %1375 = vmatprep.subr.bf16.mxu0 0
    %1376 = vmatpush1.bf16.msra.mxu0 %v997
    %1377 = vmatprep.subr.bf16.mxu0 0
    %1378 = vmatpush1.bf16.msra.mxu0 %v998
    %1379 = vmatprep.subr.bf16.mxu0 0
    %1380 = vmatpush1.bf16.msra.mxu0 %v999
    %1381 = vmatprep.subr.bf16.mxu0 0
    %1382 = vmatpush1.bf16.msra.mxu0 %v1000
    %1383 = vmatprep.subr.bf16.mxu0 0
    %1384 = vmatpush1.bf16.msra.mxu0 %v1001
    %1385 = vmatprep.subr.bf16.mxu0 0
    %1386 = vmatpush1.bf16.msra.mxu0 %v1002
    %1387 = vmatprep.subr.bf16.mxu0 0
    %1388 = vmatpush1.bf16.msra.mxu0 %v1003
    %1389 = vmatprep.subr.bf16.mxu0 0
    %1390 = vmatpush1.bf16.msra.mxu0 %v1004
    %1391 = vmatprep.subr.bf16.mxu0 0
    %1392 = vmatpush1.bf16.msra.mxu0 %v1005
    %1393 = vmatprep.subr.bf16.mxu0 0
    %1394 = vmatpush1.bf16.msra.mxu0 %v1006
    %1395 = vmatprep.subr.bf16.mxu0 0
    %1396 = vmatpush1.bf16.msra.mxu0 %v1007
    %1397 = vmatprep.subr.bf16.mxu0 0
    %1398 = vmatpush1.bf16.msra.mxu0 %v1008
    %1399 = vmatprep.subr.bf16.mxu0 0
    %1400 = vmatpush1.bf16.msra.mxu0 %v1009
    %1401 = vmatprep.subr.bf16.mxu0 0
    %1402 = vmatpush1.bf16.msra.mxu0 %v1010
    %1403 = vmatprep.mubr.bf16.mxu0 %v385
    %1404 = vmatmul.mubr.bf16.gmra.mrb[0].mxu0 %v383
    %v1405 = vpop.f32.mrb[0].mxu0
    %v1406 = vadd.f32 %v1366, %v1405
    %v1407 = vpop.f32.mrb[0].mxu0
    %v1408 = vpop.f32.mrb[0].mxu0
    %v1409 = vpop.f32.mrb[0].mxu0
    %1410 = vdwg.mxu0
    %1411 = vmatprep.subr.bf16.mxu0 0
    %1412 = vmatpush1.bf16.msra.mxu0 %v1011
    %1413 = vmatprep.subr.bf16.mxu0 0
    %1414 = vmatpush1.bf16.msra.mxu0 %v1012
    %1415 = vmatprep.subr.bf16.mxu0 0
    %1416 = vmatpush1.bf16.msra.mxu0 %v1013
    %1417 = vmatprep.subr.bf16.mxu0 0
    %1418 = vmatpush1.bf16.msra.mxu0 %v1014
    %1419 = vmatprep.subr.bf16.mxu0 0
    %1420 = vmatpush1.bf16.msra.mxu0 %v1015
    %1421 = vmatprep.subr.bf16.mxu0 0
    %1422 = vmatpush1.bf16.msra.mxu0 %v1016
    %1423 = vmatprep.subr.bf16.mxu0 0
    %1424 = vmatpush1.bf16.msra.mxu0 %v1017
    %1425 = vmatprep.subr.bf16.mxu0 0
    %1426 = vmatpush1.bf16.msra.mxu0 %v1018
    %1427 = vmatprep.subr.bf16.mxu0 0
    %1428 = vmatpush1.bf16.msra.mxu0 %v1019
    %1429 = vmatprep.subr.bf16.mxu0 0
    %1430 = vmatpush1.bf16.msra.mxu0 %v1020
    %1431 = vmatprep.subr.bf16.mxu0 0
    %1432 = vmatpush1.bf16.msra.mxu0 %v1021
    %1433 = vmatprep.subr.bf16.mxu0 0
    %1434 = vmatpush1.bf16.msra.mxu0 %v1022
    %1435 = vmatprep.subr.bf16.mxu0 0
    %1436 = vmatpush1.bf16.msra.mxu0 %v1023
    %1437 = vmatprep.subr.bf16.mxu0 0
    %1438 = vmatpush1.bf16.msra.mxu0 %v1024
    %1439 = vmatprep.subr.bf16.mxu0 0
    %1440 = vmatpush1.bf16.msra.mxu0 %v1025
    %1441 = vmatprep.subr.bf16.mxu0 0
    %1442 = vmatpush1.bf16.msra.mxu0 %v1026
    %1443 = vmatprep.mubr.bf16.mxu0 %v382
    %1444 = vmatmul.mubr.bf16.gmra.mrb[0].mxu0 %v368
    %v1445 = vpop.f32.mrb[0].mxu0
    %v1446 = vadd.f32 %v1406, %v1445
    %v1447 = vpop.f32.mrb[0].mxu0
    %v1448 = vpop.f32.mrb[0].mxu0
    %v1449 = vpop.f32.mrb[0].mxu0
    %1450 = vdwg.mxu0
    %1451 = vmatprep.subr.bf16.mxu0 0
    %1452 = vmatpush1.bf16.msra.mxu0 %v1027
    %1453 = vmatprep.subr.bf16.mxu0 0
    %1454 = vmatpush1.bf16.msra.mxu0 %v1028
    %1455 = vmatprep.subr.bf16.mxu0 0
    %1456 = vmatpush1.bf16.msra.mxu0 %v1029
    %1457 = vmatprep.subr.bf16.mxu0 0
    %1458 = vmatpush1.bf16.msra.mxu0 %v1030
    %1459 = vmatprep.subr.bf16.mxu0 0
    %1460 = vmatpush1.bf16.msra.mxu0 %v1031
    %1461 = vmatprep.subr.bf16.mxu0 0
    %1462 = vmatpush1.bf16.msra.mxu0 %v1032
    %1463 = vmatprep.subr.bf16.mxu0 0
    %1464 = vmatpush1.bf16.msra.mxu0 %v1033
    %1465 = vmatprep.subr.bf16.mxu0 0
    %1466 = vmatpush1.bf16.msra.mxu0 %v1034
    %1467 = vmatprep.subr.bf16.mxu0 0
    %1468 = vmatpush1.bf16.msra.mxu0 %v1035
    %1469 = vmatprep.subr.bf16.mxu0 0
    %1470 = vmatpush1.bf16.msra.mxu0 %v1036
    %1471 = vmatprep.subr.bf16.mxu0 0
    %1472 = vmatpush1.bf16.msra.mxu0 %v1037
    %1473 = vmatprep.subr.bf16.mxu0 0
    %1474 = vmatpush1.bf16.msra.mxu0 %v1038
    %1475 = vmatprep.subr.bf16.mxu0 0
    %1476 = vmatpush1.bf16.msra.mxu0 %v1039
    %1477 = vmatprep.subr.bf16.mxu0 0
    %1478 = vmatpush1.bf16.msra.mxu0 %v1040
    %1479 = vmatprep.subr.bf16.mxu0 0
    %1480 = vmatpush1.bf16.msra.mxu0 %v1041
    %1481 = vmatprep.subr.bf16.mxu0 0
    %1482 = vmatpush1.bf16.msra.mxu0 %v1042
    %1483 = vmatprep.mubr.bf16.mxu0 %v386
    %1484 = vmatmul.mubr.bf16.gmra.mrb[0].mxu0 %v384
    %v1485 = vpop.f32.mrb[0].mxu0
    %v1486 = vadd.f32 %v1446, %v1485
    %v1487 = vpop.f32.mrb[0].mxu0
    %v1488 = vpop.f32.mrb[0].mxu0
    %v1489 = vpop.f32.mrb[0].mxu0
    %1490 = vdwg.mxu0
    %v1491 = vadd.f32 %v28, %v1486
    %vm1492 = vcmask 517120
    %1493 = vst.msk [vmem:[#allocation2] sm:$0x3] %vm1492, %v1491
    // Predicated region
    $region26: #{cnn_forward.3} parent=1 // pred_check
      %p1494 = pneg %p22
    $region27: #{cnn_forward.3} parent=1 // pred_check_branch
      %1496 = sbr.rel (%p1494) target = $region29
    $region28: #{cnn_forward.3} parent=1 // pred_region
      %v1497 = vld [vmem:[#allocation2] sm:$0x3]
      %v1498 = vld [vmem:[%s2] sm:$0x1]
      %v1500 = vlaneseq
      %v1501 = vshrl.u32 %v1500, 7
      %v1502 = vsub.s32 0, %v1501
      %v1503 = vrot.slane %v1498, %v1502
      %v1505 = vadd.f32 %v1497, %v1503
      %v1506 = vmax.f32 %v1505, 0.0
      %v1507 = vld [vmem:[%s3] sm:$0xff]
      %v1508 = vld [vmem:[%s3 + $0x8] sm:$0xff]
      %v1509 = vld [vmem:[%s3 + $0x10] sm:$0xff]
      %v1510 = vld [vmem:[%s3 + $0x18] sm:$0xff]
      %v1511 = vld [vmem:[%s3 + $0x20] sm:$0xff]
      %v1512 = vld [vmem:[%s3 + $0x28] sm:$0xff]
      %v1513 = vld [vmem:[%s3 + $0x30] sm:$0xff]
      %v1514 = vld [vmem:[%s3 + $0x38] sm:$0xff]
      %v1515 = vld [vmem:[%s4] sm:$0x1]
      %v1517 = vlaneseq
      %v1518 = vshrl.u32 %v1517, 7
      %v1519 = vsub.s32 0, %v1518
      %v1520 = vrot.slane %v1515, %v1519
      %vm1522 = vcmask 523264
      %v1524 = vsel %vm1522, %v1506, 0
      %1526 = vmatprep.subr.mxu0 0.0
      %1527 = vmatpush1.msra.mxu0 %v1507
      %1528 = vmatprep.subr.mxu0 0.0
      %1529 = vmatpush1.msra.mxu0 %v1508
      %1530 = vmatprep.subr.mxu0 0.0
      %1531 = vmatpush1.msra.mxu0 %v1509
      %1532 = vmatprep.subr.mxu0 0.0
      %1533 = vmatpush1.msra.mxu0 %v1510
      %1534 = vmatprep.subr.mxu0 0.0
      %1535 = vmatpush1.msra.mxu0 %v1511
      %1536 = vmatprep.subr.mxu0 0.0
      %1537 = vmatpush1.msra.mxu0 %v1512
      %1538 = vmatprep.subr.mxu0 0.0
      %1539 = vmatpush1.msra.mxu0 %v1513
      %1540 = vmatprep.subr.mxu0 0.0
      %1541 = vmatpush1.msra.mxu0 %v1514
      %1542 = vmatprep.subr.mxu0 0.0
      %1543 = vmatpush1.msra.mxu0 0.0
      %1544 = vmatprep.subr.mxu0 0.0
      %1545 = vmatpush1.msra.mxu0 0.0
      %1546 = vmatprep.subr.mxu0 0.0
      %1547 = vmatpush1.msra.mxu0 0.0
      %1548 = vmatprep.subr.mxu0 0.0
      %1549 = vmatpush1.msra.mxu0 0.0
      %1550 = vmatprep.subr.mxu0 0.0
      %1551 = vmatpush1.msra.mxu0 0.0
      %1552 = vmatprep.subr.mxu0 0.0
      %1553 = vmatpush1.msra.mxu0 0.0
      %1554 = vmatprep.subr.mxu0 0.0
      %1555 = vmatpush1.msra.mxu0 0.0
      %1556 = vmatprep.subr.mxu0 0.0
      %1557 = vmatpush1.msra.mxu0 0.0
      %1558 = vmatprep.subr.mxu0 0.0
      %1559 = vmatpush1.msra.mxu0 0.0
      %1560 = vmatprep.subr.mxu0 0.0
      %1561 = vmatpush1.msra.mxu0 0.0
      %1562 = vmatprep.subr.mxu0 0.0
      %1563 = vmatpush1.msra.mxu0 0.0
      %1564 = vmatprep.subr.mxu0 0.0
      %1565 = vmatpush1.msra.mxu0 0.0
      %1566 = vmatprep.subr.mxu0 0.0
      %1567 = vmatpush1.msra.mxu0 0.0
      %1568 = vmatprep.subr.mxu0 0.0
      %1569 = vmatpush1.msra.mxu0 0.0
      %1570 = vmatprep.subr.mxu0 0.0
      %1571 = vmatpush1.msra.mxu0 0.0
      %1572 = vmatprep.subr.mxu0 0.0
      %1573 = vmatpush1.msra.mxu0 0.0
      %1574 = vmatprep.subr.mxu0 0.0
      %1575 = vmatpush1.msra.mxu0 0.0
      %1576 = vmatprep.subr.mxu0 0.0
      %1577 = vmatpush1.msra.mxu0 0.0
      %1578 = vmatprep.subr.mxu0 0.0
      %1579 = vmatpush1.msra.mxu0 0.0
      %1580 = vmatprep.subr.mxu0 0.0
      %1581 = vmatpush1.msra.mxu0 0.0
      %1582 = vmatprep.subr.mxu0 0.0
      %1583 = vmatpush1.msra.mxu0 0.0
      %1584 = vmatprep.subr.mxu0 0.0
      %1585 = vmatpush1.msra.mxu0 0.0
      %1586 = vmatprep.subr.mxu0 0.0
      %1587 = vmatpush1.msra.mxu0 0.0
      %1588 = vmatprep.subr.mxu0 0.0
      %1589 = vmatpush1.msra.mxu0 0.0
      %1590 = vmatprep.mubr.f32.mxu0 0.0
      %1591 = vmatmul.mubr.f32.gmra.mrb[0].mxu0 %v1524
      %v1592 = vpop.f32.mrb[0].mxu0
      %v1593 = vadd.f32 %v1520, %v1592
      %v1594 = vpop.f32.mrb[0].mxu0
      %1595 = vdwg.mxu0
      %vm1596 = vcmask 9216
      %1597 = vst.msk [vmem:[#allocation3] sm:$0x3] %vm1596, %v1593
    $region29: #{cnn_forward.3} parent=1 // pred_fallthru
      _
    // Predicated region
    $region30: #{cnn_forward.3} parent=1 // pred_check
      _
    $region31: #{cnn_forward.3} parent=1 // pred_check_branch
      %1599 = sbr.rel (0) target = $region33
    $region32: #{cnn_forward.3} parent=1 // pred_region
      %s1601 = ssub.s32 32, 32
      %1602 = vsyncadd [#allocation4], %s1601
      %s1604 = sshll.u32 [#allocation3], 4
      %s1605 = int_to_ptr.vmem [resolvable:$true] %s1604
      %1607 = dma.vmem_to_hbm [thread:$0]  %s1605, 32, %s5, [#allocation4]
    $region33: #{cnn_forward.3} parent=1 // pred_fallthru
      _
    // Predicated region
    $region34: #{cnn_forward.3} parent=1 // pred_check
      _
    $region35: #{cnn_forward.3} parent=1 // pred_check_branch
      %1609 = sbr.rel (0) target = $region37
    $region36: #{cnn_forward.3} parent=1 // pred_region
      %1610 = dma.done [#allocation4], 32
    $region37: #{cnn_forward.3} parent=1 // pred_fallthru
      _
    %1611 = vsyncpa [#allocation4], 1

</llo_original>
